<compile_context>
chip_gen: v6e
topology: v6e:2x2x1
jax: 0.10.0
libtpu: 0.0.40
codegen_flags: <defaults>
</compile_context>

<pallas_src>
import functools

import jax
import jax.numpy as jnp
from jax.experimental import pallas as pl
from jax.experimental.pallas import tpu as pltpu


# ----------------------- helpers (same semantics as the PyTorch code) ----------

def map_el_ind(arr, ind):
    return [a[ind] for a in arr]


def sort_and_return_indices(arr):
    indices = list(range(len(arr)))
    pairs = sorted(zip(arr, indices))
    return map_el_ind(pairs, 0), map_el_ind(pairs, 1)


# ----------------------- Pallas kernel: batched self-attention ------------------
# Each grid step processes Bb sequences at once:
#   qkv = flatten(x) @ Wqkv ; attn = softmax(q k^T / sqrt(D)) ; out = (attn v) @ Wo

def _attn_kernel(x_ref, wqkv_ref, wo_ref, o_ref, *, nb, t, d):
    # x_ref: (nb, t, d).  Collapse leading dims (layout-preserving since t % 8 == 0)
    # so the projections run as one MXU-sized matmul with M = nb * t rows.
    x = x_ref[...].reshape(nb * t, d)
    xb = x.astype(jnp.bfloat16)

    wqkv = wqkv_ref[...].astype(jnp.bfloat16)            # fused (d, 3d) projection
    qkv = jnp.dot(xb, wqkv, preferred_element_type=jnp.float32)   # (nb*t, 3d), f32 acc

    q = qkv[:, 0 * d:1 * d].reshape(nb, t, d)
    k = qkv[:, 1 * d:2 * d].reshape(nb, t, d)
    v = qkv[:, 2 * d:3 * d].reshape(nb, t, d)

    scale = d ** -0.5
    # Contract the last dims directly (batched); no transposed copy of k.
    s = jnp.einsum(
        "bqd,bkd->bqk",
        q.astype(jnp.bfloat16), k.astype(jnp.bfloat16),
        preferred_element_type=jnp.float32,
    ) * scale                                            # (nb, t, t), f32

    # numerically-stable softmax, f32 elementwise (v5e has no bf16 VPU/EUP path)
    s = s - jnp.max(s, axis=-1, keepdims=True)
    p = jnp.exp(s)
    p = p * pl.reciprocal(jnp.sum(p, axis=-1, keepdims=True), approx=True)

    o = jnp.einsum(
        "bqk,bkd->bqd",
        p.astype(jnp.bfloat16), v.astype(jnp.bfloat16),
        preferred_element_type=jnp.float32,
    )                                                    # (nb, t, d)

    o2 = o.reshape(nb * t, d).astype(jnp.bfloat16)
    out = jnp.dot(o2, wo_ref[...].astype(jnp.bfloat16),
                  preferred_element_type=jnp.float32)    # (nb*t, d)
    o_ref[...] = out.reshape(nb, t, d).astype(o_ref.dtype)


def _choose_block_batch(B, T):
    """Pick Bb (a divisor of B): Bb*T >= 256 to fill the MXU, but keep >= 2 grid
    steps when possible (v7x has 2 TensorCores), and bound the (Bb,T,T) scores."""
    want = max(1, pl.cdiv(256, T))
    divisors = [d for d in range(1, B + 1) if B % d == 0]

    def score_ok(bb):                 # keep f32 score tensor + temporaries modest
        return bb * T * T * 4 <= (4 << 20)

    for bb in divisors:
        if bb >= want and score_ok(bb) and (B // bb) >= 2:
            return bb
    for bb in divisors:
        if bb >= want and score_ok(bb):
            return bb
    return max(bb for bb in divisors if score_ok(bb))


def batched_self_attention(xbtd, wqkv, wo, *, block_b=None):
    """xbtd: (B, T, D) -> (B, T, D). Grid over B // Bb; each block holds Bb sequences."""
    B, T, D = xbtd.shape
    if block_b is None:
        block_b = _choose_block_batch(B, T)
    assert B % block_b == 0, (B, block_b)
    grid = (B // block_b,)

    kernel = functools.partial(_attn_kernel, nb=block_b, t=T, d=D)
    return pl.pallas_call(
        kernel,
        out_shape=jax.ShapeDtypeStruct((B, T, D), xbtd.dtype),
        grid_spec=pltpu.PrefetchScalarGridSpec(
            num_scalar_prefetch=0,
            grid=grid,
            in_specs=[
                pl.BlockSpec((block_b, T, D), lambda i: (i, 0, 0)),
                pl.BlockSpec((D, 3 * D), lambda i: (0, 0)),   # fused Wqkv, resident
                pl.BlockSpec((D, D), lambda i: (0, 0)),       # Wo, resident
            ],
            out_specs=pl.BlockSpec((block_b, T, D), lambda i: (i, 0, 0)),
        ),
        compiler_params=pltpu.CompilerParams(
            dimension_semantics=("parallel",),
            vmem_limit_bytes=32 * 1024 * 1024,   # safe on v5e/v6e (128 MiB) and v7x (64 MiB)
        ),
    )(xbtd, wqkv, wo)


# ----------------------- PermuteToFrom wrapper (glue stays in plain JAX) -------

class PermuteToFrom:
    def __init__(self, permutation, fn):
        self.fn = fn
        _, inv_permutation = sort_and_return_indices(permutation)
        self.permutation = tuple(permutation)
        self.inv_permutation = tuple(inv_permutation)

    def __call__(self, x, **kwargs):
        xy = jnp.transpose(x, self.permutation)      # .contiguous() is implicit in JAX
        shape = xy.shape
        *_, t, d = shape
        xy = xy.reshape(-1, t, d)
        xy = self.fn(xy, **kwargs)                   # hot path: Pallas kernel
        xy = xy.reshape(*shape)
        xy = jnp.transpose(xy, self.inv_permutation)
        return xy


# ----------------------- pure-JAX reference (matching bf16 matmul operands) ----

def _attn_ref(xbtd, wqkv, wo):
    D = xbtd.shape[-1]
    cast = lambda a: a.astype(jnp.bfloat16)
    qkv = jnp.dot(cast(xbtd), cast(wqkv), preferred_element_type=jnp.float32)
    q, k, v = qkv[..., :D], qkv[..., D:2 * D], qkv[..., 2 * D:]
    s = jnp.einsum("btd,bsd->bts", cast(q), cast(k),
                   preferred_element_type=jnp.float32) * (D ** -0.5)
    p = jax.nn.softmax(s, axis=-1)
    o = jnp.einsum("bts,bsd->btd", cast(p), cast(v),
                   preferred_element_type=jnp.float32)
    out = jnp.dot(cast(o), cast(wo), preferred_element_type=jnp.float32)
    return out.astype(xbtd.dtype)


if __name__ == "__main__":
    key = jax.random.PRNGKey(0)
    kx, kq, kk, kv, ko = jax.random.split(key, 5)

    b, c, h, w = 2, 32, 16, 16          # NCHW input
    x = jax.random.normal(kx, (b, c, h, w), dtype=jnp.float32)

    # deterministic "self-attention" parameters (dim = c)
    scale = c ** -0.5
    wq = jax.random.normal(kq, (c, c), dtype=jnp.float32) * scale
    wk = jax.random.normal(kk, (c, c), dtype=jnp.float32) * scale
    wv = jax.random.normal(kv, (c, c), dtype=jnp.float32) * scale
    wo = jax.random.normal(ko, (c, c), dtype=jnp.float32) * scale
    wqkv = jnp.concatenate([wq, wk, wv], axis=1)   # fused (D, 3D) projection weight

    fn = lambda xbtd: batched_self_attention(xbtd, wqkv, wo)
    module = PermuteToFrom((0, 3, 2, 1), fn)        # attend along the height axis

    out = jax.block_until_ready(module(x))
    assert out.shape == x.shape and out.dtype == x.dtype

    # reference check (same bf16 matmul operands / f32 accumulation as the kernel)
    ref = PermuteToFrom((0, 3, 2, 1), lambda xbtd: _attn_ref(xbtd, wqkv, wo))(x)
    err = float(jnp.max(jnp.abs(out - ref)))
    assert err < 2e-2, f"max abs err {err}"

    print("KERNEL_OK")
</pallas_src>

<mosaic_0001>
module attributes {stable_mosaic.version = 11 : i64} {
  func.func @_attn_kernel(%arg0: i32, %arg1: memref<16x16x32xf32, #tpu.memory_space<vmem>>, %arg2: memref<32x96xf32, #tpu.memory_space<vmem>>, %arg3: memref<32x32xf32, #tpu.memory_space<vmem>>, %arg4: memref<16x16x32xf32, #tpu.memory_space<vmem>>) attributes {dimension_semantics = [#tpu.dimension_semantics<parallel>], iteration_bounds = array<i64: 2>, scalar_prefetch = 0 : i64, scratch_operands = 0 : i64, tpu.core_type = #tpu.core_type<tc>, window_params = [{transform_indices = @transform_0, window_bounds = array<i64: 16, 16, 32>}, {pipeline_mode = #tpu.pipeline_mode<synchronous>, transform_indices = @transform_1, window_bounds = array<i64: 32, 96>}, {pipeline_mode = #tpu.pipeline_mode<synchronous>, transform_indices = @transform_2, window_bounds = array<i64: 32, 32>}, {transform_indices = @transform_3, window_bounds = array<i64: 16, 16, 32>}]} {
    %c0 = arith.constant 0 : index
    %c0_0 = arith.constant 0 : index
    %c0_1 = arith.constant 0 : index
    %0 = vector.load %arg1[%c0, %c0_0, %c0_1] : memref<16x16x32xf32, #tpu.memory_space<vmem>>, vector<16x16x32xf32>
    %1 = vector.shape_cast %0 : vector<16x16x32xf32> to vector<256x32xf32>
    %2 = arith.truncf %1 : vector<256x32xf32> to vector<256x32xbf16>
    %c0_2 = arith.constant 0 : index
    %c0_3 = arith.constant 0 : index
    %3 = vector.load %arg2[%c0_2, %c0_3] : memref<32x96xf32, #tpu.memory_space<vmem>>, vector<32x96xf32>
    %4 = arith.truncf %3 : vector<32x96xf32> to vector<32x96xbf16>
    %cst = arith.constant dense<0.000000e+00> : vector<256x96xf32>
    %5 = tpu.matmul %2, %4, %cst {dimension_numbers = #tpu.dot_dimension_numbers<[1], [0], [0], [1], [0, 0, 1, 1], [], []>} : vector<256x32xbf16>, vector<32x96xbf16>, vector<256x96xf32> -> vector<256x96xf32>
    %6 = vector.extract_strided_slice %5 {offsets = [0, 0], sizes = [256, 32], strides = [1, 1]} : vector<256x96xf32> to vector<256x32xf32>
    %7 = vector.shape_cast %6 : vector<256x32xf32> to vector<16x16x32xf32>
    %8 = vector.extract_strided_slice %5 {offsets = [0, 32], sizes = [256, 32], strides = [1, 1]} : vector<256x96xf32> to vector<256x32xf32>
    %9 = vector.shape_cast %8 : vector<256x32xf32> to vector<16x16x32xf32>
    %10 = vector.extract_strided_slice %5 {offsets = [0, 64], sizes = [256, 32], strides = [1, 1]} : vector<256x96xf32> to vector<256x32xf32>
    %11 = vector.shape_cast %10 : vector<256x32xf32> to vector<16x16x32xf32>
    %12 = arith.truncf %7 : vector<16x16x32xf32> to vector<16x16x32xbf16>
    %13 = arith.truncf %9 : vector<16x16x32xf32> to vector<16x16x32xbf16>
    "tpu.trace_start"() <{level = 10 : i32, message = "bqd,bkd->bqk"}> : () -> ()
    %cst_4 = arith.constant dense<0.000000e+00> : vector<16x16x16xf32>
    %14 = tpu.matmul %12, %13, %cst_4 {dimension_numbers = #tpu.dot_dimension_numbers<[2], [2], [1], [1], [0, 0, 0, 1, 1, 1], [0], [0]>} : vector<16x16x32xbf16>, vector<16x16x32xbf16>, vector<16x16x16xf32> -> vector<16x16x16xf32>
    "tpu.trace_stop"() : () -> ()
    %cst_5 = arith.constant 0.176776692 : f32
    %15 = vector.broadcast %cst_5 : f32 to vector<16x16x16xf32>
    %16 = arith.mulf %14, %15 : vector<16x16x16xf32>
    %cst_6 = arith.constant dense<0xFF800000> : vector<16x16xf32>
    %17 = vector.multi_reduction <maximumf>, %16, %cst_6 [2] : vector<16x16x16xf32> to vector<16x16xf32>
    %18 = vector.shape_cast %17 : vector<16x16xf32> to vector<16x16x1xf32>
    %19 = vector.broadcast %18 : vector<16x16x1xf32> to vector<16x16x16xf32>
    %20 = arith.subf %16, %19 : vector<16x16x16xf32>
    %21 = math.exp %20 : vector<16x16x16xf32>
    %cst_7 = arith.constant dense<0.000000e+00> : vector<16x16xf32>
    %22 = vector.multi_reduction <add>, %21, %cst_7 [2] : vector<16x16x16xf32> to vector<16x16xf32>
    %23 = vector.shape_cast %22 : vector<16x16xf32> to vector<16x16x1xf32>
    %24 = tpu.reciprocal %23 {approx = true} : vector<16x16x1xf32> -> vector<16x16x1xf32>
    %25 = vector.broadcast %24 : vector<16x16x1xf32> to vector<16x16x16xf32>
    %26 = arith.mulf %21, %25 : vector<16x16x16xf32>
    %27 = arith.truncf %26 : vector<16x16x16xf32> to vector<16x16x16xbf16>
    %28 = arith.truncf %11 : vector<16x16x32xf32> to vector<16x16x32xbf16>
    "tpu.trace_start"() <{level = 10 : i32, message = "bqk,bkd->bqd"}> : () -> ()
    %cst_8 = arith.constant dense<0.000000e+00> : vector<16x16x32xf32>
    %29 = tpu.matmul %27, %28, %cst_8 {dimension_numbers = #tpu.dot_dimension_numbers<[2], [1], [1], [2], [0, 0, 0, 1, 1, 2], [0], [0]>} : vector<16x16x16xbf16>, vector<16x16x32xbf16>, vector<16x16x32xf32> -> vector<16x16x32xf32>
    "tpu.trace_stop"() : () -> ()
    %30 = vector.shape_cast %29 : vector<16x16x32xf32> to vector<256x32xf32>
    %31 = arith.truncf %30 : vector<256x32xf32> to vector<256x32xbf16>
    %c0_9 = arith.constant 0 : index
    %c0_10 = arith.constant 0 : index
    %32 = vector.load %arg3[%c0_9, %c0_10] : memref<32x32xf32, #tpu.memory_space<vmem>>, vector<32x32xf32>
    %33 = arith.truncf %32 : vector<32x32xf32> to vector<32x32xbf16>
    %cst_11 = arith.constant dense<0.000000e+00> : vector<256x32xf32>
    %34 = tpu.matmul %31, %33, %cst_11 {dimension_numbers = #tpu.dot_dimension_numbers<[1], [0], [0], [1], [0, 0, 1, 1], [], []>} : vector<256x32xbf16>, vector<32x32xbf16>, vector<256x32xf32> -> vector<256x32xf32>
    %35 = vector.shape_cast %34 : vector<256x32xf32> to vector<16x16x32xf32>
    %c0_12 = arith.constant 0 : index
    %c0_13 = arith.constant 0 : index
    %c0_14 = arith.constant 0 : index
    %36 = vector.load %arg4[%c0_12, %c0_13, %c0_14] : memref<16x16x32xf32, #tpu.memory_space<vmem>>, vector<16x16x32xf32>
    tpu.vector_store %arg4[%c0_12, %c0_13, %c0_14], %35 {strides = array<i32>} : memref<16x16x32xf32, #tpu.memory_space<vmem>>, vector<16x16x32xf32>,
    return
  }
  func.func @transform_0(%arg0: i32) -> (i32, i32, i32) {
    %c0_i32 = arith.constant 0 : i32
    %c0_i32_0 = arith.constant 0 : i32
    %c0_i32_1 = arith.constant 0 : i32
    return %arg0, %c0_i32, %c0_i32_0 : i32, i32, i32
  }
  func.func @transform_1(%arg0: i32) -> (i32, i32) {
    %c0_i32 = arith.constant 0 : i32
    %c0_i32_0 = arith.constant 0 : i32
    %c0_i32_1 = arith.constant 0 : i32
    return %c0_i32, %c0_i32_0 : i32, i32
  }
  func.func @transform_2(%arg0: i32) -> (i32, i32) {
    %c0_i32 = arith.constant 0 : i32
    %c0_i32_0 = arith.constant 0 : i32
    %c0_i32_1 = arith.constant 0 : i32
    return %c0_i32, %c0_i32_0 : i32, i32
  }
  func.func @transform_3(%arg0: i32) -> (i32, i32, i32) {
    %c0_i32 = arith.constant 0 : i32
    %c0_i32_0 = arith.constant 0 : i32
    %c0_i32_1 = arith.constant 0 : i32
    return %arg0, %c0_i32, %c0_i32_0 : i32, i32, i32
  }
}

</mosaic_0001>

<llo_original>
// kernel: tpu_custom_call.1
$region0: #{tpu_custom_call.1}
  #allocation0 [shape = 'u32[]', space=smem, size = 0x4, offset = 0x4, fixed_abs, tag = 'smem constant byte address 0x4 - core index']
  #allocation1 [shape = 'u32[144,128]{1,0:T(1,128)}', space=vmem, size = 0x12000, scoped, tag = 'internal scratch']
  %s0 = inlined_call_operand.hbm [shape: f32[32,16,32], index: 0, kind: input, shape index: {}]
  %s1 = inlined_call_operand.hbm [shape: f32[32,96], index: 1, kind: input, shape index: {}]
  %s2 = inlined_call_operand.hbm [shape: f32[32,32], index: 2, kind: input, shape index: {}]
  %s3 = inlined_call_operand.hbm [shape: f32[32,16,32], index: 3, kind: output, shape index: {}]
  %s4 = sld [smem:[#allocation0]]
  $region57: #{tpu_custom_call.1} parent=0
    _
  %s6 = ssub.s32 1, %s4
  %s7 = scalar_select 0, %s6, %s4
  $region1: #{tpu_custom_call.1} parent=0
    #allocation2 [shape = 'u8[262144]{0}', space=vmem, size = 0x40000, scoped, tag = 'input window, operand 0']
    #allocation3 [shape = 's32[2]{0}', space=sflag, size = 0x8, scoped, tag = 'scoped memory for tpu_custom_call.1']
    #allocation4 [shape = 's32[2]{0}', space=sflag, size = 0x8, scoped, tag = 'scoped memory for tpu_custom_call.1']
    #allocation5 [shape = 'u8[16384]{0}', space=vmem, size = 0x4000, scoped, tag = 'input window, operand 1, single buffered']
    #allocation6 [shape = 's32[1]{0}', space=sflag, size = 0x4, scoped, tag = 'scoped memory for tpu_custom_call.1']
    #allocation7 [shape = 'u8[16384]{0}', space=vmem, size = 0x4000, scoped, tag = 'input window, operand 2, single buffered']
    #allocation8 [shape = 'u8[262144]{0}', space=vmem, size = 0x40000, scoped, tag = 'output window, operand 0']
    %8 = vsyncpa [#allocation3], 0
    %s9 = scalar_lea.sflag [#allocation3], 1
    %10 = vsyncpa %s9, 0
    %11 = vsyncpa [#allocation6], 0
    %12 = vsyncpa [#allocation4], 0
    %s13 = scalar_lea.sflag [#allocation4], 1
    %14 = vsyncpa %s13, 0
    loop: start=0, step=1, limit=4
    $region2: #{tpu_custom_call.1} parent=1 // loop_pre_header
      _
    $region3: #{tpu_custom_call.1} parent=1 // loop_header
      %s16 = sphi 0, %s20
      %p17 = scmp.ge.s32.totalorder %s16, 4
      %s26 = sphi 0, %s28
      %s29 = sphi 0, %s26
      %s30 = sphi 0, %s29
      %s46 = sphi 0, %s30
      %s50 = sphi 0, %s50
      %s52 = sphi 0, %s50
      %s53 = sphi 0, %s52
      %s67 = sphi 0, %s53
      %s71 = sphi 0, %s71
      %s73 = sphi 0, %s71
      %s74 = sphi 0, %s73
      %s88 = sphi 0, %s74
      %s94 = sphi 0, %s96
      %s97 = sphi 0, %s94
      %s98 = sphi 0, %s97
      %s114 = sphi 0, %s98
    $region4: #{tpu_custom_call.1} parent=1 // loop_header_branch
      %19 = sbr.rel (%p17) target = $region8
    $region5: #{tpu_custom_call.1} parent=1 // loop_body
      %s21 = ssub.s32 %s16, 1
      %s22 = ssub.s32 %s16, 2
      %s23 = sadd.s32 %s16, 1
      %s24 = ssub.s32 %s16, %s23
      %p25 = scmp.eq.s32.totalorder %s24, 0
      %s27 = sadd.s32 %s26, 1
      %s28 = scalar_select %p25, %s26, %s27
      %p31 = pneg %p25
      %p32 = scmp.eq.s32.totalorder %s16, 1
      %p33 = por %p31, %p32
      %p34 = scmp.ne.s32.totalorder %s26, %s29
      %p35 = scmp.eq.s32.totalorder %s16, 0
      %p36 = por %p34, %p35
      %p37 = scmp.ne.s32.totalorder %s26, %s29
      %p38 = scmp.eq.s32.totalorder %s21, 1
      %p39 = por %p37, %p38
      %p40 = scmp.ne.s32.totalorder %s29, %s30
      %p41 = scmp.eq.s32.totalorder %s21, 0
      %p42 = por %p40, %p41
      %p43 = scmp.ne.s32.totalorder %s29, %s30
      %p44 = scmp.eq.s32.totalorder %s22, 1
      %p45 = por %p43, %p44
      %p47 = scmp.ne.s32.totalorder %s30, %s46
      %p48 = scmp.eq.s32.totalorder %s22, 0
      %p49 = por %p47, %p48
      %s51 = sadd.s32 %s50, 1
      %p54 = scmp.eq.s32.totalorder %s16, 1
      %p55 = scmp.ne.s32.totalorder %s50, %s52
      %p56 = scmp.eq.s32.totalorder %s16, 0
      %p57 = por %p55, %p56
      %p58 = scmp.ne.s32.totalorder %s50, %s52
      %p59 = scmp.eq.s32.totalorder %s21, 1
      %p60 = por %p58, %p59
      %p61 = scmp.ne.s32.totalorder %s52, %s53
      %p62 = scmp.eq.s32.totalorder %s21, 0
      %p63 = por %p61, %p62
      %p64 = scmp.ne.s32.totalorder %s52, %s53
      %p65 = scmp.eq.s32.totalorder %s22, 1
      %p66 = por %p64, %p65
      %p68 = scmp.ne.s32.totalorder %s53, %s67
      %p69 = scmp.eq.s32.totalorder %s22, 0
      %p70 = por %p68, %p69
      %s72 = sadd.s32 %s71, 1
      %p75 = scmp.eq.s32.totalorder %s16, 1
      %p76 = scmp.ne.s32.totalorder %s71, %s73
      %p77 = scmp.eq.s32.totalorder %s16, 0
      %p78 = por %p76, %p77
      %p79 = scmp.ne.s32.totalorder %s71, %s73
      %p80 = scmp.eq.s32.totalorder %s21, 1
      %p81 = por %p79, %p80
      %p82 = scmp.ne.s32.totalorder %s73, %s74
      %p83 = scmp.eq.s32.totalorder %s21, 0
      %p84 = por %p82, %p83
      %p85 = scmp.ne.s32.totalorder %s73, %s74
      %p86 = scmp.eq.s32.totalorder %s22, 1
      %p87 = por %p85, %p86
      %p89 = scmp.ne.s32.totalorder %s74, %s88
      %p90 = scmp.eq.s32.totalorder %s22, 0
      %p91 = por %p89, %p90
      %s92 = ssub.s32 %s16, %s23
      %p93 = scmp.eq.s32.totalorder %s92, 0
      %s95 = sadd.s32 %s94, 1
      %s96 = scalar_select %p93, %s94, %s95
      %p99 = pneg %p93
      %p100 = scmp.eq.s32.totalorder %s16, 1
      %p101 = por %p99, %p100
      %p102 = scmp.ne.s32.totalorder %s94, %s97
      %p103 = scmp.eq.s32.totalorder %s16, 0
      %p104 = por %p102, %p103
      %p105 = scmp.ne.s32.totalorder %s94, %s97
      %p106 = scmp.eq.s32.totalorder %s21, 1
      %p107 = por %p105, %p106
      %p108 = scmp.ne.s32.totalorder %s97, %s98
      %p109 = scmp.eq.s32.totalorder %s21, 0
      %p110 = por %p108, %p109
      %p111 = scmp.ne.s32.totalorder %s97, %s98
      %p112 = scmp.eq.s32.totalorder %s22, 1
      %p113 = por %p111, %p112
      %p115 = scmp.ne.s32.totalorder %s98, %s114
      %p116 = scmp.eq.s32.totalorder %s22, 0
      %p117 = por %p115, %p116
      %p118 = scmp.le.s32.totalorder 1, %s16
      %p119 = scmp.lt.s32.totalorder %s16, 3
      %p120 = pnand %p118, %p119
      %p121 = pneg %p120
      // Predicated region
      $region9: #{tpu_custom_call.1} parent=5 // pred_check
        _
      $region10: #{tpu_custom_call.1} parent=5 // pred_check_branch
        %123 = sbr.rel (%p120) target = $region12
      $region11: #{tpu_custom_call.1} parent=5 // pred_region
        %s124 = ssub.s32 %s16, 1
        // Predicated region
        $region13: #{tpu_custom_call.1} parent=11 // pred_check
          %p125 = pneg %p63
        $region14: #{tpu_custom_call.1} parent=11 // pred_check_branch
          %127 = sbr.rel (%p125) target = $region16
        $region15: #{tpu_custom_call.1} parent=11 // pred_region
          %s129 = ssub.s32 512, 512
          %130 = vsyncadd [#allocation6], %s129
          %s131 = sshll.u32 [#allocation5], 4
          %s132 = int_to_ptr.vmem [resolvable:$true] %s131
          %137 = dma.hbm_to_vmem [thread:$0]  %s1, 512, %s132, [#allocation6], 128, 128, 8
        $region16: #{tpu_custom_call.1} parent=11 // pred_fallthru
          _
        // Predicated region
        $region17: #{tpu_custom_call.1} parent=11 // pred_check
          %p138 = pneg %p84
        $region18: #{tpu_custom_call.1} parent=11 // pred_check_branch
          %140 = sbr.rel (%p138) target = $region20
        $region19: #{tpu_custom_call.1} parent=11 // pred_region
          %s142 = ssub.s32 512, 512
          %143 = vsyncadd [#allocation6], %s142
          %s144 = sshll.u32 [#allocation7], 4
          %s145 = int_to_ptr.vmem [resolvable:$true] %s144
          %150 = dma.hbm_to_vmem [thread:$0]  %s2, 512, %s145, [#allocation6], 128, 128, 8
        $region20: #{tpu_custom_call.1} parent=11 // pred_fallthru
          _
      $region12: #{tpu_custom_call.1} parent=5 // pred_fallthru
        _
      %p151 = scmp.lt.s32.totalorder %s16, 2
      // Predicated region
      $region21: #{tpu_custom_call.1} parent=5 // pred_check
        %p152 = pneg %p151
      $region22: #{tpu_custom_call.1} parent=5 // pred_check_branch
        %154 = sbr.rel (%p152) target = $region24
      $region23: #{tpu_custom_call.1} parent=5 // pred_region
        // Predicated region
        $region25: #{tpu_custom_call.1} parent=23 // pred_check
          %p155 = pneg %p36
        $region26: #{tpu_custom_call.1} parent=23 // pred_check_branch
          %157 = sbr.rel (%p155) target = $region28
        $region27: #{tpu_custom_call.1} parent=23 // pred_region
          %s158 = sand.u32 %s26, 1
          %s159 = scalar_lea.sflag [#allocation3], %s158
          %s160 = sand.u32 %s26, 1
          %s161 = smul.addr %s160, 256
          %s162 = scalar_lea.vmem [#allocation2], %s161
          %s163 = smul.u32 16, %s16
          %s165 = ssub.s32 4096, 4096
          %166 = vsyncadd %s159, %s165
          %s167 = smul.addr %s163, 2
          %s168 = smul.addr %s167, 128
          %s169 = scalar_lea.hbm %s0, %s168
          %s170 = sshll.u32 %s162, 4
          %s171 = int_to_ptr.vmem [resolvable:$true] %s170
          %176 = dma.hbm_to_vmem [thread:$0]  %s169, 4096, %s171, %s159, 128, 128, 8
        $region28: #{tpu_custom_call.1} parent=23 // pred_fallthru
          _
      $region24: #{tpu_custom_call.1} parent=5 // pred_fallthru
        _
      %p177 = scmp.le.s32.totalorder 1, %s16
      %p178 = scmp.lt.s32.totalorder %s16, 3
      %p179 = pnand %p177, %p178
      %p180 = pneg %p179
      // Predicated region
      $region29: #{tpu_custom_call.1} parent=5 // pred_check
        _
      $region30: #{tpu_custom_call.1} parent=5 // pred_check_branch
        %182 = sbr.rel (%p179) target = $region32
      $region31: #{tpu_custom_call.1} parent=5 // pred_region
        %s183 = ssub.s32 %s16, 1
        %s184 = sand.u32 %s29, 1
        %s185 = scalar_lea.sflag [#allocation3], %s184
        %s186 = sand.u32 %s29, 1
        %s187 = smul.addr %s186, 256
        %s188 = scalar_lea.vmem [#allocation2], %s187
        // Predicated region
        $region33: #{tpu_custom_call.1} parent=31 // pred_check
          %p189 = pneg %p42
        $region34: #{tpu_custom_call.1} parent=31 // pred_check_branch
          %191 = sbr.rel (%p189) target = $region36
        $region35: #{tpu_custom_call.1} parent=31 // pred_region
          %192 = dma.done %s185, 4096
        $region36: #{tpu_custom_call.1} parent=31 // pred_fallthru
          _
        // Predicated region
        $region37: #{tpu_custom_call.1} parent=31 // pred_check
          %p193 = pneg %p63
        $region38: #{tpu_custom_call.1} parent=31 // pred_check_branch
          %195 = sbr.rel (%p193) target = $region40
        $region39: #{tpu_custom_call.1} parent=31 // pred_region
          %196 = dma.done [#allocation6], 512
        $region40: #{tpu_custom_call.1} parent=31 // pred_fallthru
          _
        // Predicated region
        $region41: #{tpu_custom_call.1} parent=31 // pred_check
          %p197 = pneg %p84
        $region42: #{tpu_custom_call.1} parent=31 // pred_check_branch
          %199 = sbr.rel (%p197) target = $region44
        $region43: #{tpu_custom_call.1} parent=31 // pred_region
          %200 = dma.done [#allocation6], 512
        $region44: #{tpu_custom_call.1} parent=31 // pred_fallthru
          _
        %s201 = sand.u32 %s29, 1
        %s202 = scalar_lea.sflag [#allocation3], %s201
        %s203 = sand.u32 %s29, 1
        %s204 = smul.addr %s203, 256
        %s205 = scalar_lea.vmem [#allocation2], %s204
        %p206 = pneg %p42
        %p207 = pneg %p39
        %p208 = pneg %p63
        %p209 = pneg %p60
        %p210 = pneg %p84
        %p211 = pneg %p81
        %p212 = pneg %p110
        %p213 = pneg %p107
        %s214 = sand.u32 %s97, 1
        %s215 = scalar_lea.sflag [#allocation4], %s214
        %s216 = sand.u32 %s97, 1
        %s217 = smul.addr %s216, 256
        %s218 = scalar_lea.vmem [#allocation8], %s217
        %s219 = smul.u32 16, %s21
        %s220 = smul.u32 16, %s21
        %v222 = vld [vmem:[%s188] sm:$0xff]
        %v223 = vld [vmem:[%s188 + $0x8] sm:$0xff]
        %v224 = vld [vmem:[%s188 + $0x10] sm:$0xff]
        %v225 = vld [vmem:[%s188 + $0x18] sm:$0xff]
        %v226 = vld [vmem:[%s188 + $0x20] sm:$0xff]
        %v227 = vld [vmem:[%s188 + $0x28] sm:$0xff]
        %v228 = vld [vmem:[%s188 + $0x30] sm:$0xff]
        %v229 = vld [vmem:[%s188 + $0x38] sm:$0xff]
        %v230 = vld [vmem:[%s188 + $0x40] sm:$0xff]
        %v231 = vld [vmem:[%s188 + $0x48] sm:$0xff]
        %v232 = vld [vmem:[%s188 + $0x50] sm:$0xff]
        %v233 = vld [vmem:[%s188 + $0x58] sm:$0xff]
        %v234 = vld [vmem:[%s188 + $0x60] sm:$0xff]
        %v235 = vld [vmem:[%s188 + $0x68] sm:$0xff]
        %v236 = vld [vmem:[%s188 + $0x70] sm:$0xff]
        %v237 = vld [vmem:[%s188 + $0x78] sm:$0xff]
        %v238 = vld [vmem:[%s188 + $0x80] sm:$0xff]
        %v239 = vld [vmem:[%s188 + $0x88] sm:$0xff]
        %v240 = vld [vmem:[%s188 + $0x90] sm:$0xff]
        %v241 = vld [vmem:[%s188 + $0x98] sm:$0xff]
        %v242 = vld [vmem:[%s188 + $0xa0] sm:$0xff]
        %v243 = vld [vmem:[%s188 + $0xa8] sm:$0xff]
        %v244 = vld [vmem:[%s188 + $0xb0] sm:$0xff]
        %v245 = vld [vmem:[%s188 + $0xb8] sm:$0xff]
        %v246 = vld [vmem:[%s188 + $0xc0] sm:$0xff]
        %v247 = vld [vmem:[%s188 + $0xc8] sm:$0xff]
        %v248 = vld [vmem:[%s188 + $0xd0] sm:$0xff]
        %v249 = vld [vmem:[%s188 + $0xd8] sm:$0xff]
        %v250 = vld [vmem:[%s188 + $0xe0] sm:$0xff]
        %v251 = vld [vmem:[%s188 + $0xe8] sm:$0xff]
        %v252 = vld [vmem:[%s188 + $0xf0] sm:$0xff]
        %v253 = vld [vmem:[%s188 + $0xf8] sm:$0xff]
        %v254 = vpack.c.bf16 %v223, %v222
        %v255 = vpack.c.bf16 %v225, %v224
        %v256 = vpack.c.bf16 %v227, %v226
        %v257 = vpack.c.bf16 %v229, %v228
        %v258 = vpack.c.bf16 %v231, %v230
        %v259 = vpack.c.bf16 %v233, %v232
        %v260 = vpack.c.bf16 %v235, %v234
        %v261 = vpack.c.bf16 %v237, %v236
        %v262 = vpack.c.bf16 %v239, %v238
        %v263 = vpack.c.bf16 %v241, %v240
        %v264 = vpack.c.bf16 %v243, %v242
        %v265 = vpack.c.bf16 %v245, %v244
        %v266 = vpack.c.bf16 %v247, %v246
        %v267 = vpack.c.bf16 %v249, %v248
        %v268 = vpack.c.bf16 %v251, %v250
        %v269 = vpack.c.bf16 %v253, %v252
        %v270 = vld [vmem:[#allocation5] sm:$0xff]
        %v271 = vld [vmem:[#allocation5 + $0x8] sm:$0xff]
        %v272 = vld [vmem:[#allocation5 + $0x10] sm:$0xff]
        %v273 = vld [vmem:[#allocation5 + $0x18] sm:$0xff]
        %v274 = vpack.c.bf16 %v271, %v270
        %v275 = vpack.c.bf16 %v273, %v272
        %vm276 = vcmask 261120
        %v278 = vsel %vm276, %v254, 0
        %v281 = vsel %vm276, %v255, 0
        %v284 = vsel %vm276, %v256, 0
        %v287 = vsel %vm276, %v257, 0
        %v290 = vsel %vm276, %v258, 0
        %v293 = vsel %vm276, %v259, 0
        %v296 = vsel %vm276, %v260, 0
        %v299 = vsel %vm276, %v261, 0
        %v302 = vsel %vm276, %v262, 0
        %v305 = vsel %vm276, %v263, 0
        %v308 = vsel %vm276, %v264, 0
        %v311 = vsel %vm276, %v265, 0
        %v314 = vsel %vm276, %v266, 0
        %v317 = vsel %vm276, %v267, 0
        %v320 = vsel %vm276, %v268, 0
        %v323 = vsel %vm276, %v269, 0
        %325 = vmatprep.subr.bf16.mxu0 0
        %326 = vmatpush1.bf16.msra.mxu0 0
        %327 = vmatprep.subr.bf16.mxu0 0
        %328 = vmatpush1.bf16.msra.mxu0 0
        %329 = vmatprep.subr.bf16.mxu0 0
        %330 = vmatpush1.bf16.msra.mxu0 0
        %331 = vmatprep.subr.bf16.mxu0 0
        %332 = vmatpush1.bf16.msra.mxu0 0
        %333 = vmatprep.subr.bf16.mxu0 0
        %334 = vmatpush1.bf16.msra.mxu0 0
        %335 = vmatprep.subr.bf16.mxu0 0
        %336 = vmatpush1.bf16.msra.mxu0 0
        %337 = vmatprep.subr.bf16.mxu0 0
        %338 = vmatpush1.bf16.msra.mxu0 %v275
        %339 = vmatprep.subr.bf16.mxu0 0
        %340 = vmatpush1.bf16.msra.mxu0 %v274
        %341 = vmatprep.subr.bf16.mxu0 0
        %342 = vmatpush2.bf16.msra.mxu0 0
        %343 = vmatprep.subr.bf16.mxu0 0
        %344 = vmatpush2.bf16.msra.mxu0 0
        %345 = vmatprep.subr.bf16.mxu0 0
        %346 = vmatpush2.bf16.msra.mxu0 0
        %347 = vmatprep.subr.bf16.mxu0 0
        %348 = vmatpush2.bf16.msra.mxu0 0
        %349 = vmatprep.subr.bf16.mxu0 0
        %350 = vmatpush2.bf16.msra.mxu0 0
        %351 = vmatprep.subr.bf16.mxu0 0
        %352 = vmatpush2.bf16.msra.mxu0 0
        %353 = vmatprep.subr.bf16.mxu0 0
        %354 = vmatpush2.bf16.msra.mxu0 0
        %355 = vmatprep.subr.bf16.mxu0 0
        %356 = vmatpush2.bf16.msra.mxu0 0
        %357 = vmatprep.mubr.bf16.mxu0 0
        %358 = vmatmul.mubr.bf16.gmra.mxu0 %v278
        %v359 = vpop.f32.mrf.mxu0
        %v360 = vadd.f32 0.0, %v359
        %v361 = vpop.f32.mrf.mxu0
        %v362 = vpop.f32.mrf.mxu0
        %v363 = vadd.f32 0.0, %v362
        %v364 = vpop.f32.mrf.mxu0
        %365 = vmatprep.mubr.bf16.mxu0 0
        %366 = vmatmul.mubr.bf16.gmra.mxu0 %v281
        %v367 = vpop.f32.mrf.mxu0
        %v368 = vadd.f32 0.0, %v367
        %v369 = vpop.f32.mrf.mxu0
        %v370 = vpop.f32.mrf.mxu0
        %v371 = vadd.f32 0.0, %v370
        %v372 = vpop.f32.mrf.mxu0
        %373 = vmatprep.mubr.bf16.mxu0 0
        %374 = vmatmul.mubr.bf16.gmra.mxu0 %v284
        %v375 = vpop.f32.mrf.mxu0
        %v376 = vadd.f32 0.0, %v375
        %v377 = vpop.f32.mrf.mxu0
        %v378 = vpop.f32.mrf.mxu0
        %v379 = vadd.f32 0.0, %v378
        %v380 = vpop.f32.mrf.mxu0
        %381 = vmatprep.mubr.bf16.mxu0 0
        %382 = vmatmul.mubr.bf16.gmra.mxu0 %v287
        %v383 = vpop.f32.mrf.mxu0
        %v384 = vadd.f32 0.0, %v383
        %v385 = vpop.f32.mrf.mxu0
        %v386 = vpop.f32.mrf.mxu0
        %v387 = vadd.f32 0.0, %v386
        %v388 = vpop.f32.mrf.mxu0
        %389 = vmatprep.mubr.bf16.mxu0 0
        %390 = vmatmul.mubr.bf16.gmra.mxu0 %v290
        %v391 = vpop.f32.mrf.mxu0
        %v392 = vadd.f32 0.0, %v391
        %v393 = vpop.f32.mrf.mxu0
        %v394 = vpop.f32.mrf.mxu0
        %v395 = vadd.f32 0.0, %v394
        %v396 = vpop.f32.mrf.mxu0
        %397 = vmatprep.mubr.bf16.mxu0 0
        %398 = vmatmul.mubr.bf16.gmra.mxu0 %v293
        %v399 = vpop.f32.mrf.mxu0
        %v400 = vadd.f32 0.0, %v399
        %v401 = vpop.f32.mrf.mxu0
        %v402 = vpop.f32.mrf.mxu0
        %v403 = vadd.f32 0.0, %v402
        %v404 = vpop.f32.mrf.mxu0
        %405 = vmatprep.mubr.bf16.mxu0 0
        %406 = vmatmul.mubr.bf16.gmra.mxu0 %v296
        %v407 = vpop.f32.mrf.mxu0
        %v408 = vadd.f32 0.0, %v407
        %v409 = vpop.f32.mrf.mxu0
        %v410 = vpop.f32.mrf.mxu0
        %v411 = vadd.f32 0.0, %v410
        %v412 = vpop.f32.mrf.mxu0
        %413 = vmatprep.mubr.bf16.mxu0 0
        %414 = vmatmul.mubr.bf16.gmra.mxu0 %v299
        %v415 = vpop.f32.mrf.mxu0
        %v416 = vadd.f32 0.0, %v415
        %v417 = vpop.f32.mrf.mxu0
        %v418 = vpop.f32.mrf.mxu0
        %v419 = vadd.f32 0.0, %v418
        %v420 = vpop.f32.mrf.mxu0
        %421 = vmatprep.mubr.bf16.mxu0 0
        %422 = vmatmul.mubr.bf16.gmra.mxu0 %v302
        %v423 = vpop.f32.mrf.mxu0
        %v424 = vadd.f32 0.0, %v423
        %v425 = vpop.f32.mrf.mxu0
        %v426 = vpop.f32.mrf.mxu0
        %v427 = vadd.f32 0.0, %v426
        %v428 = vpop.f32.mrf.mxu0
        %429 = vmatprep.mubr.bf16.mxu0 0
        %430 = vmatmul.mubr.bf16.gmra.mxu0 %v305
        %v431 = vpop.f32.mrf.mxu0
        %v432 = vadd.f32 0.0, %v431
        %v433 = vpop.f32.mrf.mxu0
        %v434 = vpop.f32.mrf.mxu0
        %v435 = vadd.f32 0.0, %v434
        %v436 = vpop.f32.mrf.mxu0
        %437 = vmatprep.mubr.bf16.mxu0 0
        %438 = vmatmul.mubr.bf16.gmra.mxu0 %v308
        %v439 = vpop.f32.mrf.mxu0
        %v440 = vadd.f32 0.0, %v439
        %v441 = vpop.f32.mrf.mxu0
        %v442 = vpop.f32.mrf.mxu0
        %v443 = vadd.f32 0.0, %v442
        %v444 = vpop.f32.mrf.mxu0
        %445 = vmatprep.mubr.bf16.mxu0 0
        %446 = vmatmul.mubr.bf16.gmra.mxu0 %v311
        %v447 = vpop.f32.mrf.mxu0
        %v448 = vadd.f32 0.0, %v447
        %v449 = vpop.f32.mrf.mxu0
        %v450 = vpop.f32.mrf.mxu0
        %v451 = vadd.f32 0.0, %v450
        %v452 = vpop.f32.mrf.mxu0
        %453 = vmatprep.mubr.bf16.mxu0 0
        %454 = vmatmul.mubr.bf16.gmra.mxu0 %v314
        %v455 = vpop.f32.mrf.mxu0
        %v456 = vadd.f32 0.0, %v455
        %v457 = vpop.f32.mrf.mxu0
        %v458 = vpop.f32.mrf.mxu0
        %v459 = vadd.f32 0.0, %v458
        %v460 = vpop.f32.mrf.mxu0
        %461 = vmatprep.mubr.bf16.mxu0 0
        %462 = vmatmul.mubr.bf16.gmra.mxu0 %v317
        %v463 = vpop.f32.mrf.mxu0
        %v464 = vadd.f32 0.0, %v463
        %v465 = vpop.f32.mrf.mxu0
        %v466 = vpop.f32.mrf.mxu0
        %v467 = vadd.f32 0.0, %v466
        %v468 = vpop.f32.mrf.mxu0
        %469 = vmatprep.mubr.bf16.mxu0 0
        %470 = vmatmul.mubr.bf16.gmra.mxu0 %v320
        %v471 = vpop.f32.mrf.mxu0
        %v472 = vadd.f32 0.0, %v471
        %v473 = vpop.f32.mrf.mxu0
        %v474 = vpop.f32.mrf.mxu0
        %v475 = vadd.f32 0.0, %v474
        %v476 = vpop.f32.mrf.mxu0
        %477 = vmatprep.mubr.bf16.mxu0 0
        %478 = vmatmul.mubr.bf16.gmra.mxu0 %v323
        %v479 = vpop.f32.mrf.mxu0
        %v480 = vadd.f32 0.0, %v479
        %v481 = vpop.f32.mrf.mxu0
        %v482 = vpop.f32.mrf.mxu0
        %v483 = vadd.f32 0.0, %v482
        %v484 = vpop.f32.mrf.mxu0
        %485 = vdwg.mxu0
        %v486 = vpack.c.bf16 %v363, %v360
        %v487 = vpack.c.bf16 %v371, %v368
        %v488 = vpack.c.bf16 %v379, %v376
        %v489 = vpack.c.bf16 %v387, %v384
        %v490 = vpack.c.bf16 %v395, %v392
        %v491 = vpack.c.bf16 %v403, %v400
        %v492 = vpack.c.bf16 %v411, %v408
        %v493 = vpack.c.bf16 %v419, %v416
        %v494 = vpack.c.bf16 %v427, %v424
        %v495 = vpack.c.bf16 %v435, %v432
        %v496 = vpack.c.bf16 %v443, %v440
        %v497 = vpack.c.bf16 %v451, %v448
        %v498 = vpack.c.bf16 %v459, %v456
        %v499 = vpack.c.bf16 %v467, %v464
        %v500 = vpack.c.bf16 %v475, %v472
        %v501 = vpack.c.bf16 %v483, %v480
        %503 = vrot.lane.b32.xlu0 %v486, 96
        %v504 = vpop.permute.xlu0 %503
        %v506 = vsel %vm276, %v486, 0
        %v509 = vsel %vm276, %v504, 0
        %511 = vmatprep.subr.bf16.mxu0 0
        %512 = vmatpush1.bf16.xpose.msra.mxu0 0
        %513 = vmatprep.subr.bf16.mxu0 0
        %514 = vmatpush1.bf16.xpose.msra.mxu0 0
        %515 = vmatprep.subr.bf16.mxu0 0
        %516 = vmatpush1.bf16.xpose.msra.mxu0 0
        %517 = vmatprep.subr.bf16.mxu0 0
        %518 = vmatpush1.bf16.xpose.msra.mxu0 0
        %519 = vmatprep.subr.bf16.mxu0 0
        %520 = vmatpush1.bf16.xpose.msra.mxu0 0
        %521 = vmatprep.subr.bf16.mxu0 0
        %522 = vmatpush1.bf16.xpose.msra.mxu0 0
        %523 = vmatprep.subr.bf16.mxu0 0
        %524 = vmatpush1.bf16.xpose.msra.mxu0 0
        %525 = vmatprep.subr.bf16.mxu0 0
        %526 = vmatpush1.bf16.xpose.msra.mxu0 %v509
        %527 = vmatprep.subr.bf16.mxu0 0
        %528 = vmatpush2.bf16.xpose.msra.mxu0 0
        %529 = vmatprep.subr.bf16.mxu0 0
        %530 = vmatpush2.bf16.xpose.msra.mxu0 0
        %531 = vmatprep.subr.bf16.mxu0 0
        %532 = vmatpush2.bf16.xpose.msra.mxu0 0
        %533 = vmatprep.subr.bf16.mxu0 0
        %534 = vmatpush2.bf16.xpose.msra.mxu0 0
        %535 = vmatprep.subr.bf16.mxu0 0
        %536 = vmatpush2.bf16.xpose.msra.mxu0 0
        %537 = vmatprep.subr.bf16.mxu0 0
        %538 = vmatpush2.bf16.xpose.msra.mxu0 0
        %539 = vmatprep.subr.bf16.mxu0 0
        %540 = vmatpush2.bf16.xpose.msra.mxu0 0
        %541 = vmatprep.subr.bf16.mxu0 0
        %542 = vmatpush2.bf16.xpose.msra.mxu0 0
        %543 = vmatprep.mubr.bf16.mxu0 0
        %544 = vmatmul.mubr.bf16.gmra.mxu0 %v506
        %v545 = vpop.f32.mrf.mxu0
        %v546 = vadd.f32 0.0, %v545
        %v547 = vpop.f32.mrf.mxu0
        %v548 = vpop.f32.mrf.mxu0
        %v549 = vadd.f32 0.0, %v548
        %v550 = vpop.f32.mrf.mxu0
        %551 = vdwg.mxu0
        %553 = vrot.lane.b32.xlu0 %v487, 96
        %v554 = vpop.permute.xlu0 %553
        %v556 = vsel %vm276, %v487, 0
        %v559 = vsel %vm276, %v554, 0
        %561 = vmatprep.subr.bf16.mxu0 0
        %562 = vmatpush1.bf16.xpose.msra.mxu0 0
        %563 = vmatprep.subr.bf16.mxu0 0
        %564 = vmatpush1.bf16.xpose.msra.mxu0 0
        %565 = vmatprep.subr.bf16.mxu0 0
        %566 = vmatpush1.bf16.xpose.msra.mxu0 0
        %567 = vmatprep.subr.bf16.mxu0 0
        %568 = vmatpush1.bf16.xpose.msra.mxu0 0
        %569 = vmatprep.subr.bf16.mxu0 0
        %570 = vmatpush1.bf16.xpose.msra.mxu0 0
        %571 = vmatprep.subr.bf16.mxu0 0
        %572 = vmatpush1.bf16.xpose.msra.mxu0 0
        %573 = vmatprep.subr.bf16.mxu0 0
        %574 = vmatpush1.bf16.xpose.msra.mxu0 0
        %575 = vmatprep.subr.bf16.mxu0 0
        %576 = vmatpush1.bf16.xpose.msra.mxu0 %v559
        %577 = vmatprep.subr.bf16.mxu0 0
        %578 = vmatpush2.bf16.xpose.msra.mxu0 0
        %579 = vmatprep.subr.bf16.mxu0 0
        %580 = vmatpush2.bf16.xpose.msra.mxu0 0
        %581 = vmatprep.subr.bf16.mxu0 0
        %582 = vmatpush2.bf16.xpose.msra.mxu0 0
        %583 = vmatprep.subr.bf16.mxu0 0
        %584 = vmatpush2.bf16.xpose.msra.mxu0 0
        %585 = vmatprep.subr.bf16.mxu0 0
        %586 = vmatpush2.bf16.xpose.msra.mxu0 0
        %587 = vmatprep.subr.bf16.mxu0 0
        %588 = vmatpush2.bf16.xpose.msra.mxu0 0
        %589 = vmatprep.subr.bf16.mxu0 0
        %590 = vmatpush2.bf16.xpose.msra.mxu0 0
        %591 = vmatprep.subr.bf16.mxu0 0
        %592 = vmatpush2.bf16.xpose.msra.mxu0 0
        %593 = vmatprep.mubr.bf16.mxu0 0
        %594 = vmatmul.mubr.bf16.gmra.mxu0 %v556
        %v595 = vpop.f32.mrf.mxu0
        %v596 = vadd.f32 0.0, %v595
        %v597 = vpop.f32.mrf.mxu0
        %v598 = vpop.f32.mrf.mxu0
        %v599 = vadd.f32 0.0, %v598
        %v600 = vpop.f32.mrf.mxu0
        %601 = vdwg.mxu0
        %603 = vrot.lane.b32.xlu0 %v488, 96
        %v604 = vpop.permute.xlu0 %603
        %v606 = vsel %vm276, %v488, 0
        %v609 = vsel %vm276, %v604, 0
        %611 = vmatprep.subr.bf16.mxu0 0
        %612 = vmatpush1.bf16.xpose.msra.mxu0 0
        %613 = vmatprep.subr.bf16.mxu0 0
        %614 = vmatpush1.bf16.xpose.msra.mxu0 0
        %615 = vmatprep.subr.bf16.mxu0 0
        %616 = vmatpush1.bf16.xpose.msra.mxu0 0
        %617 = vmatprep.subr.bf16.mxu0 0
        %618 = vmatpush1.bf16.xpose.msra.mxu0 0
        %619 = vmatprep.subr.bf16.mxu0 0
        %620 = vmatpush1.bf16.xpose.msra.mxu0 0
        %621 = vmatprep.subr.bf16.mxu0 0
        %622 = vmatpush1.bf16.xpose.msra.mxu0 0
        %623 = vmatprep.subr.bf16.mxu0 0
        %624 = vmatpush1.bf16.xpose.msra.mxu0 0
        %625 = vmatprep.subr.bf16.mxu0 0
        %626 = vmatpush1.bf16.xpose.msra.mxu0 %v609
        %627 = vmatprep.subr.bf16.mxu0 0
        %628 = vmatpush2.bf16.xpose.msra.mxu0 0
        %629 = vmatprep.subr.bf16.mxu0 0
        %630 = vmatpush2.bf16.xpose.msra.mxu0 0
        %631 = vmatprep.subr.bf16.mxu0 0
        %632 = vmatpush2.bf16.xpose.msra.mxu0 0
        %633 = vmatprep.subr.bf16.mxu0 0
        %634 = vmatpush2.bf16.xpose.msra.mxu0 0
        %635 = vmatprep.subr.bf16.mxu0 0
        %636 = vmatpush2.bf16.xpose.msra.mxu0 0
        %637 = vmatprep.subr.bf16.mxu0 0
        %638 = vmatpush2.bf16.xpose.msra.mxu0 0
        %639 = vmatprep.subr.bf16.mxu0 0
        %640 = vmatpush2.bf16.xpose.msra.mxu0 0
        %641 = vmatprep.subr.bf16.mxu0 0
        %642 = vmatpush2.bf16.xpose.msra.mxu0 0
        %643 = vmatprep.mubr.bf16.mxu0 0
        %644 = vmatmul.mubr.bf16.gmra.mxu0 %v606
        %v645 = vpop.f32.mrf.mxu0
        %v646 = vadd.f32 0.0, %v645
        %v647 = vpop.f32.mrf.mxu0
        %v648 = vpop.f32.mrf.mxu0
        %v649 = vadd.f32 0.0, %v648
        %v650 = vpop.f32.mrf.mxu0
        %651 = vdwg.mxu0
        %653 = vrot.lane.b32.xlu0 %v489, 96
        %v654 = vpop.permute.xlu0 %653
        %v656 = vsel %vm276, %v489, 0
        %v659 = vsel %vm276, %v654, 0
        %661 = vmatprep.subr.bf16.mxu0 0
        %662 = vmatpush1.bf16.xpose.msra.mxu0 0
        %663 = vmatprep.subr.bf16.mxu0 0
        %664 = vmatpush1.bf16.xpose.msra.mxu0 0
        %665 = vmatprep.subr.bf16.mxu0 0
        %666 = vmatpush1.bf16.xpose.msra.mxu0 0
        %667 = vmatprep.subr.bf16.mxu0 0
        %668 = vmatpush1.bf16.xpose.msra.mxu0 0
        %669 = vmatprep.subr.bf16.mxu0 0
        %670 = vmatpush1.bf16.xpose.msra.mxu0 0
        %671 = vmatprep.subr.bf16.mxu0 0
        %672 = vmatpush1.bf16.xpose.msra.mxu0 0
        %673 = vmatprep.subr.bf16.mxu0 0
        %674 = vmatpush1.bf16.xpose.msra.mxu0 0
        %675 = vmatprep.subr.bf16.mxu0 0
        %676 = vmatpush1.bf16.xpose.msra.mxu0 %v659
        %677 = vmatprep.subr.bf16.mxu0 0
        %678 = vmatpush2.bf16.xpose.msra.mxu0 0
        %679 = vmatprep.subr.bf16.mxu0 0
        %680 = vmatpush2.bf16.xpose.msra.mxu0 0
        %681 = vmatprep.subr.bf16.mxu0 0
        %682 = vmatpush2.bf16.xpose.msra.mxu0 0
        %683 = vmatprep.subr.bf16.mxu0 0
        %684 = vmatpush2.bf16.xpose.msra.mxu0 0
        %685 = vmatprep.subr.bf16.mxu0 0
        %686 = vmatpush2.bf16.xpose.msra.mxu0 0
        %687 = vmatprep.subr.bf16.mxu0 0
        %688 = vmatpush2.bf16.xpose.msra.mxu0 0
        %689 = vmatprep.subr.bf16.mxu0 0
        %690 = vmatpush2.bf16.xpose.msra.mxu0 0
        %691 = vmatprep.subr.bf16.mxu0 0
        %692 = vmatpush2.bf16.xpose.msra.mxu0 0
        %693 = vmatprep.mubr.bf16.mxu0 0
        %694 = vmatmul.mubr.bf16.gmra.mxu0 %v656
        %v695 = vpop.f32.mrf.mxu0
        %v696 = vadd.f32 0.0, %v695
        %v697 = vpop.f32.mrf.mxu0
        %v698 = vpop.f32.mrf.mxu0
        %v699 = vadd.f32 0.0, %v698
        %v700 = vpop.f32.mrf.mxu0
        %701 = vdwg.mxu0
        %703 = vrot.lane.b32.xlu0 %v490, 96
        %v704 = vpop.permute.xlu0 %703
        %v706 = vsel %vm276, %v490, 0
        %v709 = vsel %vm276, %v704, 0
        %711 = vmatprep.subr.bf16.mxu0 0
        %712 = vmatpush1.bf16.xpose.msra.mxu0 0
        %713 = vmatprep.subr.bf16.mxu0 0
        %714 = vmatpush1.bf16.xpose.msra.mxu0 0
        %715 = vmatprep.subr.bf16.mxu0 0
        %716 = vmatpush1.bf16.xpose.msra.mxu0 0
        %717 = vmatprep.subr.bf16.mxu0 0
        %718 = vmatpush1.bf16.xpose.msra.mxu0 0
        %719 = vmatprep.subr.bf16.mxu0 0
        %720 = vmatpush1.bf16.xpose.msra.mxu0 0
        %721 = vmatprep.subr.bf16.mxu0 0
        %722 = vmatpush1.bf16.xpose.msra.mxu0 0
        %723 = vmatprep.subr.bf16.mxu0 0
        %724 = vmatpush1.bf16.xpose.msra.mxu0 0
        %725 = vmatprep.subr.bf16.mxu0 0
        %726 = vmatpush1.bf16.xpose.msra.mxu0 %v709
        %727 = vmatprep.subr.bf16.mxu0 0
        %728 = vmatpush2.bf16.xpose.msra.mxu0 0
        %729 = vmatprep.subr.bf16.mxu0 0
        %730 = vmatpush2.bf16.xpose.msra.mxu0 0
        %731 = vmatprep.subr.bf16.mxu0 0
        %732 = vmatpush2.bf16.xpose.msra.mxu0 0
        %733 = vmatprep.subr.bf16.mxu0 0
        %734 = vmatpush2.bf16.xpose.msra.mxu0 0
        %735 = vmatprep.subr.bf16.mxu0 0
        %736 = vmatpush2.bf16.xpose.msra.mxu0 0
        %737 = vmatprep.subr.bf16.mxu0 0
        %738 = vmatpush2.bf16.xpose.msra.mxu0 0
        %739 = vmatprep.subr.bf16.mxu0 0
        %740 = vmatpush2.bf16.xpose.msra.mxu0 0
        %741 = vmatprep.subr.bf16.mxu0 0
        %742 = vmatpush2.bf16.xpose.msra.mxu0 0
        %743 = vmatprep.mubr.bf16.mxu0 0
        %744 = vmatmul.mubr.bf16.gmra.mxu0 %v706
        %v745 = vpop.f32.mrf.mxu0
        %v746 = vadd.f32 0.0, %v745
        %v747 = vpop.f32.mrf.mxu0
        %v748 = vpop.f32.mrf.mxu0
        %v749 = vadd.f32 0.0, %v748
        %v750 = vpop.f32.mrf.mxu0
        %751 = vdwg.mxu0
        %753 = vrot.lane.b32.xlu0 %v491, 96
        %v754 = vpop.permute.xlu0 %753
        %v756 = vsel %vm276, %v491, 0
        %v759 = vsel %vm276, %v754, 0
        %761 = vmatprep.subr.bf16.mxu0 0
        %762 = vmatpush1.bf16.xpose.msra.mxu0 0
        %763 = vmatprep.subr.bf16.mxu0 0
        %764 = vmatpush1.bf16.xpose.msra.mxu0 0
        %765 = vmatprep.subr.bf16.mxu0 0
        %766 = vmatpush1.bf16.xpose.msra.mxu0 0
        %767 = vmatprep.subr.bf16.mxu0 0
        %768 = vmatpush1.bf16.xpose.msra.mxu0 0
        %769 = vmatprep.subr.bf16.mxu0 0
        %770 = vmatpush1.bf16.xpose.msra.mxu0 0
        %771 = vmatprep.subr.bf16.mxu0 0
        %772 = vmatpush1.bf16.xpose.msra.mxu0 0
        %773 = vmatprep.subr.bf16.mxu0 0
        %774 = vmatpush1.bf16.xpose.msra.mxu0 0
        %775 = vmatprep.subr.bf16.mxu0 0
        %776 = vmatpush1.bf16.xpose.msra.mxu0 %v759
        %777 = vmatprep.subr.bf16.mxu0 0
        %778 = vmatpush2.bf16.xpose.msra.mxu0 0
        %779 = vmatprep.subr.bf16.mxu0 0
        %780 = vmatpush2.bf16.xpose.msra.mxu0 0
        %781 = vmatprep.subr.bf16.mxu0 0
        %782 = vmatpush2.bf16.xpose.msra.mxu0 0
        %783 = vmatprep.subr.bf16.mxu0 0
        %784 = vmatpush2.bf16.xpose.msra.mxu0 0
        %785 = vmatprep.subr.bf16.mxu0 0
        %786 = vmatpush2.bf16.xpose.msra.mxu0 0
        %787 = vmatprep.subr.bf16.mxu0 0
        %788 = vmatpush2.bf16.xpose.msra.mxu0 0
        %789 = vmatprep.subr.bf16.mxu0 0
        %790 = vmatpush2.bf16.xpose.msra.mxu0 0
        %791 = vmatprep.subr.bf16.mxu0 0
        %792 = vmatpush2.bf16.xpose.msra.mxu0 0
        %793 = vmatprep.mubr.bf16.mxu0 0
        %794 = vmatmul.mubr.bf16.gmra.mxu0 %v756
        %v795 = vpop.f32.mrf.mxu0
        %v796 = vadd.f32 0.0, %v795
        %v797 = vpop.f32.mrf.mxu0
        %v798 = vpop.f32.mrf.mxu0
        %v799 = vadd.f32 0.0, %v798
        %v800 = vpop.f32.mrf.mxu0
        %801 = vdwg.mxu0
        %803 = vrot.lane.b32.xlu0 %v492, 96
        %v804 = vpop.permute.xlu0 %803
        %v806 = vsel %vm276, %v492, 0
        %v809 = vsel %vm276, %v804, 0
        %811 = vmatprep.subr.bf16.mxu0 0
        %812 = vmatpush1.bf16.xpose.msra.mxu0 0
        %813 = vmatprep.subr.bf16.mxu0 0
        %814 = vmatpush1.bf16.xpose.msra.mxu0 0
        %815 = vmatprep.subr.bf16.mxu0 0
        %816 = vmatpush1.bf16.xpose.msra.mxu0 0
        %817 = vmatprep.subr.bf16.mxu0 0
        %818 = vmatpush1.bf16.xpose.msra.mxu0 0
        %819 = vmatprep.subr.bf16.mxu0 0
        %820 = vmatpush1.bf16.xpose.msra.mxu0 0
        %821 = vmatprep.subr.bf16.mxu0 0
        %822 = vmatpush1.bf16.xpose.msra.mxu0 0
        %823 = vmatprep.subr.bf16.mxu0 0
        %824 = vmatpush1.bf16.xpose.msra.mxu0 0
        %825 = vmatprep.subr.bf16.mxu0 0
        %826 = vmatpush1.bf16.xpose.msra.mxu0 %v809
        %827 = vmatprep.subr.bf16.mxu0 0
        %828 = vmatpush2.bf16.xpose.msra.mxu0 0
        %829 = vmatprep.subr.bf16.mxu0 0
        %830 = vmatpush2.bf16.xpose.msra.mxu0 0
        %831 = vmatprep.subr.bf16.mxu0 0
        %832 = vmatpush2.bf16.xpose.msra.mxu0 0
        %833 = vmatprep.subr.bf16.mxu0 0
        %834 = vmatpush2.bf16.xpose.msra.mxu0 0
        %835 = vmatprep.subr.bf16.mxu0 0
        %836 = vmatpush2.bf16.xpose.msra.mxu0 0
        %837 = vmatprep.subr.bf16.mxu0 0
        %838 = vmatpush2.bf16.xpose.msra.mxu0 0
        %839 = vmatprep.subr.bf16.mxu0 0
        %840 = vmatpush2.bf16.xpose.msra.mxu0 0
        %841 = vmatprep.subr.bf16.mxu0 0
        %842 = vmatpush2.bf16.xpose.msra.mxu0 0
        %843 = vmatprep.mubr.bf16.mxu0 0
        %844 = vmatmul.mubr.bf16.gmra.mxu0 %v806
        %v845 = vpop.f32.mrf.mxu0
        %v846 = vadd.f32 0.0, %v845
        %v847 = vpop.f32.mrf.mxu0
        %v848 = vpop.f32.mrf.mxu0
        %v849 = vadd.f32 0.0, %v848
        %v850 = vpop.f32.mrf.mxu0
        %851 = vdwg.mxu0
        %853 = vrot.lane.b32.xlu0 %v493, 96
        %v854 = vpop.permute.xlu0 %853
        %v856 = vsel %vm276, %v493, 0
        %v859 = vsel %vm276, %v854, 0
        %861 = vmatprep.subr.bf16.mxu0 0
        %862 = vmatpush1.bf16.xpose.msra.mxu0 0
        %863 = vmatprep.subr.bf16.mxu0 0
        %864 = vmatpush1.bf16.xpose.msra.mxu0 0
        %865 = vmatprep.subr.bf16.mxu0 0
        %866 = vmatpush1.bf16.xpose.msra.mxu0 0
        %867 = vmatprep.subr.bf16.mxu0 0
        %868 = vmatpush1.bf16.xpose.msra.mxu0 0
        %869 = vmatprep.subr.bf16.mxu0 0
        %870 = vmatpush1.bf16.xpose.msra.mxu0 0
        %871 = vmatprep.subr.bf16.mxu0 0
        %872 = vmatpush1.bf16.xpose.msra.mxu0 0
        %873 = vmatprep.subr.bf16.mxu0 0
        %874 = vmatpush1.bf16.xpose.msra.mxu0 0
        %875 = vmatprep.subr.bf16.mxu0 0
        %876 = vmatpush1.bf16.xpose.msra.mxu0 %v859
        %877 = vmatprep.subr.bf16.mxu0 0
        %878 = vmatpush2.bf16.xpose.msra.mxu0 0
        %879 = vmatprep.subr.bf16.mxu0 0
        %880 = vmatpush2.bf16.xpose.msra.mxu0 0
        %881 = vmatprep.subr.bf16.mxu0 0
        %882 = vmatpush2.bf16.xpose.msra.mxu0 0
        %883 = vmatprep.subr.bf16.mxu0 0
        %884 = vmatpush2.bf16.xpose.msra.mxu0 0
        %885 = vmatprep.subr.bf16.mxu0 0
        %886 = vmatpush2.bf16.xpose.msra.mxu0 0
        %887 = vmatprep.subr.bf16.mxu0 0
        %888 = vmatpush2.bf16.xpose.msra.mxu0 0
        %889 = vmatprep.subr.bf16.mxu0 0
        %890 = vmatpush2.bf16.xpose.msra.mxu0 0
        %891 = vmatprep.subr.bf16.mxu0 0
        %892 = vmatpush2.bf16.xpose.msra.mxu0 0
        %893 = vmatprep.mubr.bf16.mxu0 0
        %894 = vmatmul.mubr.bf16.gmra.mxu0 %v856
        %v895 = vpop.f32.mrf.mxu0
        %v896 = vadd.f32 0.0, %v895
        %v897 = vpop.f32.mrf.mxu0
        %v898 = vpop.f32.mrf.mxu0
        %v899 = vadd.f32 0.0, %v898
        %v900 = vpop.f32.mrf.mxu0
        %901 = vdwg.mxu0
        %903 = vrot.lane.b32.xlu0 %v494, 96
        %v904 = vpop.permute.xlu0 %903
        %v906 = vsel %vm276, %v494, 0
        %v909 = vsel %vm276, %v904, 0
        %911 = vmatprep.subr.bf16.mxu0 0
        %912 = vmatpush1.bf16.xpose.msra.mxu0 0
        %913 = vmatprep.subr.bf16.mxu0 0
        %914 = vmatpush1.bf16.xpose.msra.mxu0 0
        %915 = vmatprep.subr.bf16.mxu0 0
        %916 = vmatpush1.bf16.xpose.msra.mxu0 0
        %917 = vmatprep.subr.bf16.mxu0 0
        %918 = vmatpush1.bf16.xpose.msra.mxu0 0
        %919 = vmatprep.subr.bf16.mxu0 0
        %920 = vmatpush1.bf16.xpose.msra.mxu0 0
        %921 = vmatprep.subr.bf16.mxu0 0
        %922 = vmatpush1.bf16.xpose.msra.mxu0 0
        %923 = vmatprep.subr.bf16.mxu0 0
        %924 = vmatpush1.bf16.xpose.msra.mxu0 0
        %925 = vmatprep.subr.bf16.mxu0 0
        %926 = vmatpush1.bf16.xpose.msra.mxu0 %v909
        %927 = vmatprep.subr.bf16.mxu0 0
        %928 = vmatpush2.bf16.xpose.msra.mxu0 0
        %929 = vmatprep.subr.bf16.mxu0 0
        %930 = vmatpush2.bf16.xpose.msra.mxu0 0
        %931 = vmatprep.subr.bf16.mxu0 0
        %932 = vmatpush2.bf16.xpose.msra.mxu0 0
        %933 = vmatprep.subr.bf16.mxu0 0
        %934 = vmatpush2.bf16.xpose.msra.mxu0 0
        %935 = vmatprep.subr.bf16.mxu0 0
        %936 = vmatpush2.bf16.xpose.msra.mxu0 0
        %937 = vmatprep.subr.bf16.mxu0 0
        %938 = vmatpush2.bf16.xpose.msra.mxu0 0
        %939 = vmatprep.subr.bf16.mxu0 0
        %940 = vmatpush2.bf16.xpose.msra.mxu0 0
        %941 = vmatprep.subr.bf16.mxu0 0
        %942 = vmatpush2.bf16.xpose.msra.mxu0 0
        %943 = vmatprep.mubr.bf16.mxu0 0
        %944 = vmatmul.mubr.bf16.gmra.mxu0 %v906
        %v945 = vpop.f32.mrf.mxu0
        %v946 = vadd.f32 0.0, %v945
        %v947 = vpop.f32.mrf.mxu0
        %v948 = vpop.f32.mrf.mxu0
        %v949 = vadd.f32 0.0, %v948
        %v950 = vpop.f32.mrf.mxu0
        %951 = vdwg.mxu0
        %953 = vrot.lane.b32.xlu0 %v495, 96
        %v954 = vpop.permute.xlu0 %953
        %v956 = vsel %vm276, %v495, 0
        %v959 = vsel %vm276, %v954, 0
        %961 = vmatprep.subr.bf16.mxu0 0
        %962 = vmatpush1.bf16.xpose.msra.mxu0 0
        %963 = vmatprep.subr.bf16.mxu0 0
        %964 = vmatpush1.bf16.xpose.msra.mxu0 0
        %965 = vmatprep.subr.bf16.mxu0 0
        %966 = vmatpush1.bf16.xpose.msra.mxu0 0
        %967 = vmatprep.subr.bf16.mxu0 0
        %968 = vmatpush1.bf16.xpose.msra.mxu0 0
        %969 = vmatprep.subr.bf16.mxu0 0
        %970 = vmatpush1.bf16.xpose.msra.mxu0 0
        %971 = vmatprep.subr.bf16.mxu0 0
        %972 = vmatpush1.bf16.xpose.msra.mxu0 0
        %973 = vmatprep.subr.bf16.mxu0 0
        %974 = vmatpush1.bf16.xpose.msra.mxu0 0
        %975 = vmatprep.subr.bf16.mxu0 0
        %976 = vmatpush1.bf16.xpose.msra.mxu0 %v959
        %977 = vmatprep.subr.bf16.mxu0 0
        %978 = vmatpush2.bf16.xpose.msra.mxu0 0
        %979 = vmatprep.subr.bf16.mxu0 0
        %980 = vmatpush2.bf16.xpose.msra.mxu0 0
        %981 = vmatprep.subr.bf16.mxu0 0
        %982 = vmatpush2.bf16.xpose.msra.mxu0 0
        %983 = vmatprep.subr.bf16.mxu0 0
        %984 = vmatpush2.bf16.xpose.msra.mxu0 0
        %985 = vmatprep.subr.bf16.mxu0 0
        %986 = vmatpush2.bf16.xpose.msra.mxu0 0
        %987 = vmatprep.subr.bf16.mxu0 0
        %988 = vmatpush2.bf16.xpose.msra.mxu0 0
        %989 = vmatprep.subr.bf16.mxu0 0
        %990 = vmatpush2.bf16.xpose.msra.mxu0 0
        %991 = vmatprep.subr.bf16.mxu0 0
        %992 = vmatpush2.bf16.xpose.msra.mxu0 0
        %993 = vmatprep.mubr.bf16.mxu0 0
        %994 = vmatmul.mubr.bf16.gmra.mxu0 %v956
        %v995 = vpop.f32.mrf.mxu0
        %v996 = vadd.f32 0.0, %v995
        %v997 = vpop.f32.mrf.mxu0
        %v998 = vpop.f32.mrf.mxu0
        %v999 = vadd.f32 0.0, %v998
        %v1000 = vpop.f32.mrf.mxu0
        %1001 = vdwg.mxu0
        %1003 = vrot.lane.b32.xlu0 %v496, 96
        %v1004 = vpop.permute.xlu0 %1003
        %v1006 = vsel %vm276, %v496, 0
        %v1009 = vsel %vm276, %v1004, 0
        %1011 = vmatprep.subr.bf16.mxu0 0
        %1012 = vmatpush1.bf16.xpose.msra.mxu0 0
        %1013 = vmatprep.subr.bf16.mxu0 0
        %1014 = vmatpush1.bf16.xpose.msra.mxu0 0
        %1015 = vmatprep.subr.bf16.mxu0 0
        %1016 = vmatpush1.bf16.xpose.msra.mxu0 0
        %1017 = vmatprep.subr.bf16.mxu0 0
        %1018 = vmatpush1.bf16.xpose.msra.mxu0 0
        %1019 = vmatprep.subr.bf16.mxu0 0
        %1020 = vmatpush1.bf16.xpose.msra.mxu0 0
        %1021 = vmatprep.subr.bf16.mxu0 0
        %1022 = vmatpush1.bf16.xpose.msra.mxu0 0
        %1023 = vmatprep.subr.bf16.mxu0 0
        %1024 = vmatpush1.bf16.xpose.msra.mxu0 0
        %1025 = vmatprep.subr.bf16.mxu0 0
        %1026 = vmatpush1.bf16.xpose.msra.mxu0 %v1009
        %1027 = vmatprep.subr.bf16.mxu0 0
        %1028 = vmatpush2.bf16.xpose.msra.mxu0 0
        %1029 = vmatprep.subr.bf16.mxu0 0
        %1030 = vmatpush2.bf16.xpose.msra.mxu0 0
        %1031 = vmatprep.subr.bf16.mxu0 0
        %1032 = vmatpush2.bf16.xpose.msra.mxu0 0
        %1033 = vmatprep.subr.bf16.mxu0 0
        %1034 = vmatpush2.bf16.xpose.msra.mxu0 0
        %1035 = vmatprep.subr.bf16.mxu0 0
        %1036 = vmatpush2.bf16.xpose.msra.mxu0 0
        %1037 = vmatprep.subr.bf16.mxu0 0
        %1038 = vmatpush2.bf16.xpose.msra.mxu0 0
        %1039 = vmatprep.subr.bf16.mxu0 0
        %1040 = vmatpush2.bf16.xpose.msra.mxu0 0
        %1041 = vmatprep.subr.bf16.mxu0 0
        %1042 = vmatpush2.bf16.xpose.msra.mxu0 0
        %1043 = vmatprep.mubr.bf16.mxu0 0
        %1044 = vmatmul.mubr.bf16.gmra.mxu0 %v1006
        %v1045 = vpop.f32.mrf.mxu0
        %v1046 = vadd.f32 0.0, %v1045
        %v1047 = vpop.f32.mrf.mxu0
        %v1048 = vpop.f32.mrf.mxu0
        %v1049 = vadd.f32 0.0, %v1048
        %v1050 = vpop.f32.mrf.mxu0
        %1051 = vdwg.mxu0
        %1053 = vrot.lane.b32.xlu0 %v497, 96
        %v1054 = vpop.permute.xlu0 %1053
        %v1056 = vsel %vm276, %v497, 0
        %v1059 = vsel %vm276, %v1054, 0
        %1061 = vmatprep.subr.bf16.mxu0 0
        %1062 = vmatpush1.bf16.xpose.msra.mxu0 0
        %1063 = vmatprep.subr.bf16.mxu0 0
        %1064 = vmatpush1.bf16.xpose.msra.mxu0 0
        %1065 = vmatprep.subr.bf16.mxu0 0
        %1066 = vmatpush1.bf16.xpose.msra.mxu0 0
        %1067 = vmatprep.subr.bf16.mxu0 0
        %1068 = vmatpush1.bf16.xpose.msra.mxu0 0
        %1069 = vmatprep.subr.bf16.mxu0 0
        %1070 = vmatpush1.bf16.xpose.msra.mxu0 0
        %1071 = vmatprep.subr.bf16.mxu0 0
        %1072 = vmatpush1.bf16.xpose.msra.mxu0 0
        %1073 = vmatprep.subr.bf16.mxu0 0
        %1074 = vmatpush1.bf16.xpose.msra.mxu0 0
        %1075 = vmatprep.subr.bf16.mxu0 0
        %1076 = vmatpush1.bf16.xpose.msra.mxu0 %v1059
        %1077 = vmatprep.subr.bf16.mxu0 0
        %1078 = vmatpush2.bf16.xpose.msra.mxu0 0
        %1079 = vmatprep.subr.bf16.mxu0 0
        %1080 = vmatpush2.bf16.xpose.msra.mxu0 0
        %1081 = vmatprep.subr.bf16.mxu0 0
        %1082 = vmatpush2.bf16.xpose.msra.mxu0 0
        %1083 = vmatprep.subr.bf16.mxu0 0
        %1084 = vmatpush2.bf16.xpose.msra.mxu0 0
        %1085 = vmatprep.subr.bf16.mxu0 0
        %1086 = vmatpush2.bf16.xpose.msra.mxu0 0
        %1087 = vmatprep.subr.bf16.mxu0 0
        %1088 = vmatpush2.bf16.xpose.msra.mxu0 0
        %1089 = vmatprep.subr.bf16.mxu0 0
        %1090 = vmatpush2.bf16.xpose.msra.mxu0 0
        %1091 = vmatprep.subr.bf16.mxu0 0
        %1092 = vmatpush2.bf16.xpose.msra.mxu0 0
        %1093 = vmatprep.mubr.bf16.mxu0 0
        %1094 = vmatmul.mubr.bf16.gmra.mxu0 %v1056
        %v1095 = vpop.f32.mrf.mxu0
        %v1096 = vadd.f32 0.0, %v1095
        %v1097 = vpop.f32.mrf.mxu0
        %v1098 = vpop.f32.mrf.mxu0
        %v1099 = vadd.f32 0.0, %v1098
        %v1100 = vpop.f32.mrf.mxu0
        %1101 = vdwg.mxu0
        %1103 = vrot.lane.b32.xlu0 %v498, 96
        %v1104 = vpop.permute.xlu0 %1103
        %v1106 = vsel %vm276, %v498, 0
        %v1109 = vsel %vm276, %v1104, 0
        %1111 = vmatprep.subr.bf16.mxu0 0
        %1112 = vmatpush1.bf16.xpose.msra.mxu0 0
        %1113 = vmatprep.subr.bf16.mxu0 0
        %1114 = vmatpush1.bf16.xpose.msra.mxu0 0
        %1115 = vmatprep.subr.bf16.mxu0 0
        %1116 = vmatpush1.bf16.xpose.msra.mxu0 0
        %1117 = vmatprep.subr.bf16.mxu0 0
        %1118 = vmatpush1.bf16.xpose.msra.mxu0 0
        %1119 = vmatprep.subr.bf16.mxu0 0
        %1120 = vmatpush1.bf16.xpose.msra.mxu0 0
        %1121 = vmatprep.subr.bf16.mxu0 0
        %1122 = vmatpush1.bf16.xpose.msra.mxu0 0
        %1123 = vmatprep.subr.bf16.mxu0 0
        %1124 = vmatpush1.bf16.xpose.msra.mxu0 0
        %1125 = vmatprep.subr.bf16.mxu0 0
        %1126 = vmatpush1.bf16.xpose.msra.mxu0 %v1109
        %1127 = vmatprep.subr.bf16.mxu0 0
        %1128 = vmatpush2.bf16.xpose.msra.mxu0 0
        %1129 = vmatprep.subr.bf16.mxu0 0
        %1130 = vmatpush2.bf16.xpose.msra.mxu0 0
        %1131 = vmatprep.subr.bf16.mxu0 0
        %1132 = vmatpush2.bf16.xpose.msra.mxu0 0
        %1133 = vmatprep.subr.bf16.mxu0 0
        %1134 = vmatpush2.bf16.xpose.msra.mxu0 0
        %1135 = vmatprep.subr.bf16.mxu0 0
        %1136 = vmatpush2.bf16.xpose.msra.mxu0 0
        %1137 = vmatprep.subr.bf16.mxu0 0
        %1138 = vmatpush2.bf16.xpose.msra.mxu0 0
        %1139 = vmatprep.subr.bf16.mxu0 0
        %1140 = vmatpush2.bf16.xpose.msra.mxu0 0
        %1141 = vmatprep.subr.bf16.mxu0 0
        %1142 = vmatpush2.bf16.xpose.msra.mxu0 0
        %1143 = vmatprep.mubr.bf16.mxu0 0
        %1144 = vmatmul.mubr.bf16.gmra.mxu0 %v1106
        %v1145 = vpop.f32.mrf.mxu0
        %v1146 = vadd.f32 0.0, %v1145
        %v1147 = vpop.f32.mrf.mxu0
        %v1148 = vpop.f32.mrf.mxu0
        %v1149 = vadd.f32 0.0, %v1148
        %v1150 = vpop.f32.mrf.mxu0
        %1151 = vdwg.mxu0
        %1153 = vrot.lane.b32.xlu0 %v499, 96
        %v1154 = vpop.permute.xlu0 %1153
        %v1156 = vsel %vm276, %v499, 0
        %v1159 = vsel %vm276, %v1154, 0
        %1161 = vmatprep.subr.bf16.mxu0 0
        %1162 = vmatpush1.bf16.xpose.msra.mxu0 0
        %1163 = vmatprep.subr.bf16.mxu0 0
        %1164 = vmatpush1.bf16.xpose.msra.mxu0 0
        %1165 = vmatprep.subr.bf16.mxu0 0
        %1166 = vmatpush1.bf16.xpose.msra.mxu0 0
        %1167 = vmatprep.subr.bf16.mxu0 0
        %1168 = vmatpush1.bf16.xpose.msra.mxu0 0
        %1169 = vmatprep.subr.bf16.mxu0 0
        %1170 = vmatpush1.bf16.xpose.msra.mxu0 0
        %1171 = vmatprep.subr.bf16.mxu0 0
        %1172 = vmatpush1.bf16.xpose.msra.mxu0 0
        %1173 = vmatprep.subr.bf16.mxu0 0
        %1174 = vmatpush1.bf16.xpose.msra.mxu0 0
        %1175 = vmatprep.subr.bf16.mxu0 0
        %1176 = vmatpush1.bf16.xpose.msra.mxu0 %v1159
        %1177 = vmatprep.subr.bf16.mxu0 0
        %1178 = vmatpush2.bf16.xpose.msra.mxu0 0
        %1179 = vmatprep.subr.bf16.mxu0 0
        %1180 = vmatpush2.bf16.xpose.msra.mxu0 0
        %1181 = vmatprep.subr.bf16.mxu0 0
        %1182 = vmatpush2.bf16.xpose.msra.mxu0 0
        %1183 = vmatprep.subr.bf16.mxu0 0
        %1184 = vmatpush2.bf16.xpose.msra.mxu0 0
        %1185 = vmatprep.subr.bf16.mxu0 0
        %1186 = vmatpush2.bf16.xpose.msra.mxu0 0
        %1187 = vmatprep.subr.bf16.mxu0 0
        %1188 = vmatpush2.bf16.xpose.msra.mxu0 0
        %1189 = vmatprep.subr.bf16.mxu0 0
        %1190 = vmatpush2.bf16.xpose.msra.mxu0 0
        %1191 = vmatprep.subr.bf16.mxu0 0
        %1192 = vmatpush2.bf16.xpose.msra.mxu0 0
        %1193 = vmatprep.mubr.bf16.mxu0 0
        %1194 = vmatmul.mubr.bf16.gmra.mxu0 %v1156
        %v1195 = vpop.f32.mrf.mxu0
        %v1196 = vadd.f32 0.0, %v1195
        %v1197 = vpop.f32.mrf.mxu0
        %v1198 = vpop.f32.mrf.mxu0
        %v1199 = vadd.f32 0.0, %v1198
        %v1200 = vpop.f32.mrf.mxu0
        %1201 = vdwg.mxu0
        %1203 = vrot.lane.b32.xlu0 %v500, 96
        %v1204 = vpop.permute.xlu0 %1203
        %v1206 = vsel %vm276, %v500, 0
        %v1209 = vsel %vm276, %v1204, 0
        %1211 = vmatprep.subr.bf16.mxu0 0
        %1212 = vmatpush1.bf16.xpose.msra.mxu0 0
        %1213 = vmatprep.subr.bf16.mxu0 0
        %1214 = vmatpush1.bf16.xpose.msra.mxu0 0
        %1215 = vmatprep.subr.bf16.mxu0 0
        %1216 = vmatpush1.bf16.xpose.msra.mxu0 0
        %1217 = vmatprep.subr.bf16.mxu0 0
        %1218 = vmatpush1.bf16.xpose.msra.mxu0 0
        %1219 = vmatprep.subr.bf16.mxu0 0
        %1220 = vmatpush1.bf16.xpose.msra.mxu0 0
        %1221 = vmatprep.subr.bf16.mxu0 0
        %1222 = vmatpush1.bf16.xpose.msra.mxu0 0
        %1223 = vmatprep.subr.bf16.mxu0 0
        %1224 = vmatpush1.bf16.xpose.msra.mxu0 0
        %1225 = vmatprep.subr.bf16.mxu0 0
        %1226 = vmatpush1.bf16.xpose.msra.mxu0 %v1209
        %1227 = vmatprep.subr.bf16.mxu0 0
        %1228 = vmatpush2.bf16.xpose.msra.mxu0 0
        %1229 = vmatprep.subr.bf16.mxu0 0
        %1230 = vmatpush2.bf16.xpose.msra.mxu0 0
        %1231 = vmatprep.subr.bf16.mxu0 0
        %1232 = vmatpush2.bf16.xpose.msra.mxu0 0
        %1233 = vmatprep.subr.bf16.mxu0 0
        %1234 = vmatpush2.bf16.xpose.msra.mxu0 0
        %1235 = vmatprep.subr.bf16.mxu0 0
        %1236 = vmatpush2.bf16.xpose.msra.mxu0 0
        %1237 = vmatprep.subr.bf16.mxu0 0
        %1238 = vmatpush2.bf16.xpose.msra.mxu0 0
        %1239 = vmatprep.subr.bf16.mxu0 0
        %1240 = vmatpush2.bf16.xpose.msra.mxu0 0
        %1241 = vmatprep.subr.bf16.mxu0 0
        %1242 = vmatpush2.bf16.xpose.msra.mxu0 0
        %1243 = vmatprep.mubr.bf16.mxu0 0
        %1244 = vmatmul.mubr.bf16.gmra.mxu0 %v1206
        %v1245 = vpop.f32.mrf.mxu0
        %v1246 = vadd.f32 0.0, %v1245
        %v1247 = vpop.f32.mrf.mxu0
        %v1248 = vpop.f32.mrf.mxu0
        %v1249 = vadd.f32 0.0, %v1248
        %v1250 = vpop.f32.mrf.mxu0
        %1251 = vdwg.mxu0
        %1253 = vrot.lane.b32.xlu0 %v501, 96
        %v1254 = vpop.permute.xlu0 %1253
        %v1256 = vsel %vm276, %v501, 0
        %v1259 = vsel %vm276, %v1254, 0
        %1261 = vmatprep.subr.bf16.mxu0 0
        %1262 = vmatpush1.bf16.xpose.msra.mxu0 0
        %1263 = vmatprep.subr.bf16.mxu0 0
        %1264 = vmatpush1.bf16.xpose.msra.mxu0 0
        %1265 = vmatprep.subr.bf16.mxu0 0
        %1266 = vmatpush1.bf16.xpose.msra.mxu0 0
        %1267 = vmatprep.subr.bf16.mxu0 0
        %1268 = vmatpush1.bf16.xpose.msra.mxu0 0
        %1269 = vmatprep.subr.bf16.mxu0 0
        %1270 = vmatpush1.bf16.xpose.msra.mxu0 0
        %1271 = vmatprep.subr.bf16.mxu0 0
        %1272 = vmatpush1.bf16.xpose.msra.mxu0 0
        %1273 = vmatprep.subr.bf16.mxu0 0
        %1274 = vmatpush1.bf16.xpose.msra.mxu0 0
        %1275 = vmatprep.subr.bf16.mxu0 0
        %1276 = vmatpush1.bf16.xpose.msra.mxu0 %v1259
        %1277 = vmatprep.subr.bf16.mxu0 0
        %1278 = vmatpush2.bf16.xpose.msra.mxu0 0
        %1279 = vmatprep.subr.bf16.mxu0 0
        %1280 = vmatpush2.bf16.xpose.msra.mxu0 0
        %1281 = vmatprep.subr.bf16.mxu0 0
        %1282 = vmatpush2.bf16.xpose.msra.mxu0 0
        %1283 = vmatprep.subr.bf16.mxu0 0
        %1284 = vmatpush2.bf16.xpose.msra.mxu0 0
        %1285 = vmatprep.subr.bf16.mxu0 0
        %1286 = vmatpush2.bf16.xpose.msra.mxu0 0
        %1287 = vmatprep.subr.bf16.mxu0 0
        %1288 = vmatpush2.bf16.xpose.msra.mxu0 0
        %1289 = vmatprep.subr.bf16.mxu0 0
        %1290 = vmatpush2.bf16.xpose.msra.mxu0 0
        %1291 = vmatprep.subr.bf16.mxu0 0
        %1292 = vmatpush2.bf16.xpose.msra.mxu0 0
        %1293 = vmatprep.mubr.bf16.mxu0 0
        %1294 = vmatmul.mubr.bf16.gmra.mxu0 %v1256
        %v1295 = vpop.f32.mrf.mxu0
        %v1296 = vadd.f32 0.0, %v1295
        %v1297 = vpop.f32.mrf.mxu0
        %v1298 = vpop.f32.mrf.mxu0
        %v1299 = vadd.f32 0.0, %v1298
        %v1300 = vpop.f32.mrf.mxu0
        %1301 = vdwg.mxu0
        %v1302 = vmul.f32 %v546, 0.17677669
        %v1303 = vmul.f32 %v549, 0.17677669
        %v1304 = vmul.f32 %v596, 0.17677669
        %v1305 = vmul.f32 %v599, 0.17677669
        %v1306 = vmul.f32 %v646, 0.17677669
        %v1307 = vmul.f32 %v649, 0.17677669
        %v1308 = vmul.f32 %v696, 0.17677669
        %v1309 = vmul.f32 %v699, 0.17677669
        %v1310 = vmul.f32 %v746, 0.17677669
        %v1311 = vmul.f32 %v749, 0.17677669
        %v1312 = vmul.f32 %v796, 0.17677669
        %v1313 = vmul.f32 %v799, 0.17677669
        %v1314 = vmul.f32 %v846, 0.17677669
        %v1315 = vmul.f32 %v849, 0.17677669
        %v1316 = vmul.f32 %v896, 0.17677669
        %v1317 = vmul.f32 %v899, 0.17677669
        %v1318 = vmul.f32 %v946, 0.17677669
        %v1319 = vmul.f32 %v949, 0.17677669
        %v1320 = vmul.f32 %v996, 0.17677669
        %v1321 = vmul.f32 %v999, 0.17677669
        %v1322 = vmul.f32 %v1046, 0.17677669
        %v1323 = vmul.f32 %v1049, 0.17677669
        %v1324 = vmul.f32 %v1096, 0.17677669
        %v1325 = vmul.f32 %v1099, 0.17677669
        %v1326 = vmul.f32 %v1146, 0.17677669
        %v1327 = vmul.f32 %v1149, 0.17677669
        %v1328 = vmul.f32 %v1196, 0.17677669
        %v1329 = vmul.f32 %v1199, 0.17677669
        %v1330 = vmul.f32 %v1246, 0.17677669
        %v1331 = vmul.f32 %v1249, 0.17677669
        %v1332 = vmul.f32 %v1296, 0.17677669
        %v1333 = vmul.f32 %v1299, 0.17677669
        %vm1334 = vcmask 130048
        %v1335 = vsel %vm1334, %v1302, -inf
        %1336 = vmax.xlane.f32.xlu0 %v1335
        %v1337 = vpop.xlane.xlu0 %1336
        %v1338 = vsel %vm1334, %v1303, -inf
        %1339 = vmax.xlane.f32.xlu0 %v1338
        %v1340 = vpop.xlane.xlu0 %1339
        %v1341 = vsel %vm1334, %v1304, -inf
        %1342 = vmax.xlane.f32.xlu0 %v1341
        %v1343 = vpop.xlane.xlu0 %1342
        %v1344 = vsel %vm1334, %v1305, -inf
        %1345 = vmax.xlane.f32.xlu0 %v1344
        %v1346 = vpop.xlane.xlu0 %1345
        %v1347 = vsel %vm1334, %v1306, -inf
        %1348 = vmax.xlane.f32.xlu0 %v1347
        %v1349 = vpop.xlane.xlu0 %1348
        %v1350 = vsel %vm1334, %v1307, -inf
        %1351 = vmax.xlane.f32.xlu0 %v1350
        %v1352 = vpop.xlane.xlu0 %1351
        %v1353 = vsel %vm1334, %v1308, -inf
        %1354 = vmax.xlane.f32.xlu0 %v1353
        %v1355 = vpop.xlane.xlu0 %1354
        %v1356 = vsel %vm1334, %v1309, -inf
        %1357 = vmax.xlane.f32.xlu0 %v1356
        %v1358 = vpop.xlane.xlu0 %1357
        %v1359 = vsel %vm1334, %v1310, -inf
        %1360 = vmax.xlane.f32.xlu0 %v1359
        %v1361 = vpop.xlane.xlu0 %1360
        %v1362 = vsel %vm1334, %v1311, -inf
        %1363 = vmax.xlane.f32.xlu0 %v1362
        %v1364 = vpop.xlane.xlu0 %1363
        %v1365 = vsel %vm1334, %v1312, -inf
        %1366 = vmax.xlane.f32.xlu0 %v1365
        %v1367 = vpop.xlane.xlu0 %1366
        %v1368 = vsel %vm1334, %v1313, -inf
        %1369 = vmax.xlane.f32.xlu0 %v1368
        %v1370 = vpop.xlane.xlu0 %1369
        %v1371 = vsel %vm1334, %v1314, -inf
        %1372 = vmax.xlane.f32.xlu0 %v1371
        %v1373 = vpop.xlane.xlu0 %1372
        %v1374 = vsel %vm1334, %v1315, -inf
        %1375 = vmax.xlane.f32.xlu0 %v1374
        %v1376 = vpop.xlane.xlu0 %1375
        %v1377 = vsel %vm1334, %v1316, -inf
        %1378 = vmax.xlane.f32.xlu0 %v1377
        %v1379 = vpop.xlane.xlu0 %1378
        %v1380 = vsel %vm1334, %v1317, -inf
        %1381 = vmax.xlane.f32.xlu0 %v1380
        %v1382 = vpop.xlane.xlu0 %1381
        %v1383 = vsel %vm1334, %v1318, -inf
        %1384 = vmax.xlane.f32.xlu0 %v1383
        %v1385 = vpop.xlane.xlu0 %1384
        %v1386 = vsel %vm1334, %v1319, -inf
        %1387 = vmax.xlane.f32.xlu0 %v1386
        %v1388 = vpop.xlane.xlu0 %1387
        %v1389 = vsel %vm1334, %v1320, -inf
        %1390 = vmax.xlane.f32.xlu0 %v1389
        %v1391 = vpop.xlane.xlu0 %1390
        %v1392 = vsel %vm1334, %v1321, -inf
        %1393 = vmax.xlane.f32.xlu0 %v1392
        %v1394 = vpop.xlane.xlu0 %1393
        %v1395 = vsel %vm1334, %v1322, -inf
        %1396 = vmax.xlane.f32.xlu0 %v1395
        %v1397 = vpop.xlane.xlu0 %1396
        %v1398 = vsel %vm1334, %v1323, -inf
        %1399 = vmax.xlane.f32.xlu0 %v1398
        %v1400 = vpop.xlane.xlu0 %1399
        %v1401 = vsel %vm1334, %v1324, -inf
        %1402 = vmax.xlane.f32.xlu0 %v1401
        %v1403 = vpop.xlane.xlu0 %1402
        %v1404 = vsel %vm1334, %v1325, -inf
        %1405 = vmax.xlane.f32.xlu0 %v1404
        %v1406 = vpop.xlane.xlu0 %1405
        %v1407 = vsel %vm1334, %v1326, -inf
        %1408 = vmax.xlane.f32.xlu0 %v1407
        %v1409 = vpop.xlane.xlu0 %1408
        %v1410 = vsel %vm1334, %v1327, -inf
        %1411 = vmax.xlane.f32.xlu0 %v1410
        %v1412 = vpop.xlane.xlu0 %1411
        %v1413 = vsel %vm1334, %v1328, -inf
        %1414 = vmax.xlane.f32.xlu0 %v1413
        %v1415 = vpop.xlane.xlu0 %1414
        %v1416 = vsel %vm1334, %v1329, -inf
        %1417 = vmax.xlane.f32.xlu0 %v1416
        %v1418 = vpop.xlane.xlu0 %1417
        %v1419 = vsel %vm1334, %v1330, -inf
        %1420 = vmax.xlane.f32.xlu0 %v1419
        %v1421 = vpop.xlane.xlu0 %1420
        %v1422 = vsel %vm1334, %v1331, -inf
        %1423 = vmax.xlane.f32.xlu0 %v1422
        %v1424 = vpop.xlane.xlu0 %1423
        %v1425 = vsel %vm1334, %v1332, -inf
        %1426 = vmax.xlane.f32.xlu0 %v1425
        %v1427 = vpop.xlane.xlu0 %1426
        %v1428 = vsel %vm1334, %v1333, -inf
        %1429 = vmax.xlane.f32.xlu0 %v1428
        %v1430 = vpop.xlane.xlu0 %1429
        %v1431 = vsub.f32 %v1302, %v1337
        %v1432 = vsub.f32 %v1303, %v1340
        %v1433 = vsub.f32 %v1304, %v1343
        %v1434 = vsub.f32 %v1305, %v1346
        %v1435 = vsub.f32 %v1306, %v1349
        %v1436 = vsub.f32 %v1307, %v1352
        %v1437 = vsub.f32 %v1308, %v1355
        %v1438 = vsub.f32 %v1309, %v1358
        %v1439 = vsub.f32 %v1310, %v1361
        %v1440 = vsub.f32 %v1311, %v1364
        %v1441 = vsub.f32 %v1312, %v1367
        %v1442 = vsub.f32 %v1313, %v1370
        %v1443 = vsub.f32 %v1314, %v1373
        %v1444 = vsub.f32 %v1315, %v1376
        %v1445 = vsub.f32 %v1316, %v1379
        %v1446 = vsub.f32 %v1317, %v1382
        %v1447 = vsub.f32 %v1318, %v1385
        %v1448 = vsub.f32 %v1319, %v1388
        %v1449 = vsub.f32 %v1320, %v1391
        %v1450 = vsub.f32 %v1321, %v1394
        %v1451 = vsub.f32 %v1322, %v1397
        %v1452 = vsub.f32 %v1323, %v1400
        %v1453 = vsub.f32 %v1324, %v1403
        %v1454 = vsub.f32 %v1325, %v1406
        %v1455 = vsub.f32 %v1326, %v1409
        %v1456 = vsub.f32 %v1327, %v1412
        %v1457 = vsub.f32 %v1328, %v1415
        %v1458 = vsub.f32 %v1329, %v1418
        %v1459 = vsub.f32 %v1330, %v1421
        %v1460 = vsub.f32 %v1331, %v1424
        %v1461 = vsub.f32 %v1332, %v1427
        %v1462 = vsub.f32 %v1333, %v1430
        %v1463 = vmul.f32 %v1431, 1.442695
        %v1464 = vpow.pop %v1463
        %v1465 = vmul.f32 %v1432, 1.442695
        %v1466 = vpow.pop %v1465
        %v1467 = vmul.f32 %v1433, 1.442695
        %v1468 = vpow.pop %v1467
        %v1469 = vmul.f32 %v1434, 1.442695
        %v1470 = vpow.pop %v1469
        %v1471 = vmul.f32 %v1435, 1.442695
        %v1472 = vpow.pop %v1471
        %v1473 = vmul.f32 %v1436, 1.442695
        %v1474 = vpow.pop %v1473
        %v1475 = vmul.f32 %v1437, 1.442695
        %v1476 = vpow.pop %v1475
        %v1477 = vmul.f32 %v1438, 1.442695
        %v1478 = vpow.pop %v1477
        %v1479 = vmul.f32 %v1439, 1.442695
        %v1480 = vpow.pop %v1479
        %v1481 = vmul.f32 %v1440, 1.442695
        %v1482 = vpow.pop %v1481
        %v1483 = vmul.f32 %v1441, 1.442695
        %v1484 = vpow.pop %v1483
        %v1485 = vmul.f32 %v1442, 1.442695
        %v1486 = vpow.pop %v1485
        %v1487 = vmul.f32 %v1443, 1.442695
        %v1488 = vpow.pop %v1487
        %v1489 = vmul.f32 %v1444, 1.442695
        %v1490 = vpow.pop %v1489
        %v1491 = vmul.f32 %v1445, 1.442695
        %v1492 = vpow.pop %v1491
        %v1493 = vmul.f32 %v1446, 1.442695
        %v1494 = vpow.pop %v1493
        %v1495 = vmul.f32 %v1447, 1.442695
        %v1496 = vpow.pop %v1495
        %v1497 = vmul.f32 %v1448, 1.442695
        %v1498 = vpow.pop %v1497
        %v1499 = vmul.f32 %v1449, 1.442695
        %v1500 = vpow.pop %v1499
        %v1501 = vmul.f32 %v1450, 1.442695
        %v1502 = vpow.pop %v1501
        %v1503 = vmul.f32 %v1451, 1.442695
        %v1504 = vpow.pop %v1503
        %v1505 = vmul.f32 %v1452, 1.442695
        %v1506 = vpow.pop %v1505
        %v1507 = vmul.f32 %v1453, 1.442695
        %v1508 = vpow.pop %v1507
        %v1509 = vmul.f32 %v1454, 1.442695
        %v1510 = vpow.pop %v1509
        %v1511 = vmul.f32 %v1455, 1.442695
        %v1512 = vpow.pop %v1511
        %v1513 = vmul.f32 %v1456, 1.442695
        %v1514 = vpow.pop %v1513
        %v1515 = vmul.f32 %v1457, 1.442695
        %v1516 = vpow.pop %v1515
        %v1517 = vmul.f32 %v1458, 1.442695
        %v1518 = vpow.pop %v1517
        %v1519 = vmul.f32 %v1459, 1.442695
        %v1520 = vpow.pop %v1519
        %v1521 = vmul.f32 %v1460, 1.442695
        %v1522 = vpow.pop %v1521
        %v1523 = vmul.f32 %v1461, 1.442695
        %v1524 = vpow.pop %v1523
        %v1525 = vmul.f32 %v1462, 1.442695
        %v1526 = vpow.pop %v1525
        %v1527 = vsel %vm1334, %v1464, 0.0
        %1528 = vadd.xlane.f32.xlu0 %v1527
        %v1529 = vpop.xlane.xlu0 %1528
        %v1530 = vsel %vm1334, %v1466, 0.0
        %1531 = vadd.xlane.f32.xlu0 %v1530
        %v1532 = vpop.xlane.xlu0 %1531
        %v1533 = vsel %vm1334, %v1468, 0.0
        %1534 = vadd.xlane.f32.xlu0 %v1533
        %v1535 = vpop.xlane.xlu0 %1534
        %v1536 = vsel %vm1334, %v1470, 0.0
        %1537 = vadd.xlane.f32.xlu0 %v1536
        %v1538 = vpop.xlane.xlu0 %1537
        %v1539 = vsel %vm1334, %v1472, 0.0
        %1540 = vadd.xlane.f32.xlu0 %v1539
        %v1541 = vpop.xlane.xlu0 %1540
        %v1542 = vsel %vm1334, %v1474, 0.0
        %1543 = vadd.xlane.f32.xlu0 %v1542
        %v1544 = vpop.xlane.xlu0 %1543
        %v1545 = vsel %vm1334, %v1476, 0.0
        %1546 = vadd.xlane.f32.xlu0 %v1545
        %v1547 = vpop.xlane.xlu0 %1546
        %v1548 = vsel %vm1334, %v1478, 0.0
        %1549 = vadd.xlane.f32.xlu0 %v1548
        %v1550 = vpop.xlane.xlu0 %1549
        %v1551 = vsel %vm1334, %v1480, 0.0
        %1552 = vadd.xlane.f32.xlu0 %v1551
        %v1553 = vpop.xlane.xlu0 %1552
        %v1554 = vsel %vm1334, %v1482, 0.0
        %1555 = vadd.xlane.f32.xlu0 %v1554
        %v1556 = vpop.xlane.xlu0 %1555
        %v1557 = vsel %vm1334, %v1484, 0.0
        %1558 = vadd.xlane.f32.xlu0 %v1557
        %v1559 = vpop.xlane.xlu0 %1558
        %v1560 = vsel %vm1334, %v1486, 0.0
        %1561 = vadd.xlane.f32.xlu0 %v1560
        %v1562 = vpop.xlane.xlu0 %1561
        %v1563 = vsel %vm1334, %v1488, 0.0
        %1564 = vadd.xlane.f32.xlu0 %v1563
        %v1565 = vpop.xlane.xlu0 %1564
        %v1566 = vsel %vm1334, %v1490, 0.0
        %1567 = vadd.xlane.f32.xlu0 %v1566
        %v1568 = vpop.xlane.xlu0 %1567
        %v1569 = vsel %vm1334, %v1492, 0.0
        %1570 = vadd.xlane.f32.xlu0 %v1569
        %v1571 = vpop.xlane.xlu0 %1570
        %v1572 = vsel %vm1334, %v1494, 0.0
        %1573 = vadd.xlane.f32.xlu0 %v1572
        %v1574 = vpop.xlane.xlu0 %1573
        %v1575 = vsel %vm1334, %v1496, 0.0
        %1576 = vadd.xlane.f32.xlu0 %v1575
        %v1577 = vpop.xlane.xlu0 %1576
        %v1578 = vsel %vm1334, %v1498, 0.0
        %1579 = vadd.xlane.f32.xlu0 %v1578
        %v1580 = vpop.xlane.xlu0 %1579
        %v1581 = vsel %vm1334, %v1500, 0.0
        %1582 = vadd.xlane.f32.xlu0 %v1581
        %v1583 = vpop.xlane.xlu0 %1582
        %v1584 = vsel %vm1334, %v1502, 0.0
        %1585 = vadd.xlane.f32.xlu0 %v1584
        %v1586 = vpop.xlane.xlu0 %1585
        %v1587 = vsel %vm1334, %v1504, 0.0
        %1588 = vadd.xlane.f32.xlu0 %v1587
        %v1589 = vpop.xlane.xlu0 %1588
        %v1590 = vsel %vm1334, %v1506, 0.0
        %1591 = vadd.xlane.f32.xlu0 %v1590
        %v1592 = vpop.xlane.xlu0 %1591
        %v1593 = vsel %vm1334, %v1508, 0.0
        %1594 = vadd.xlane.f32.xlu0 %v1593
        %v1595 = vpop.xlane.xlu0 %1594
        %v1596 = vsel %vm1334, %v1510, 0.0
        %1597 = vadd.xlane.f32.xlu0 %v1596
        %v1598 = vpop.xlane.xlu0 %1597
        %v1599 = vsel %vm1334, %v1512, 0.0
        %1600 = vadd.xlane.f32.xlu0 %v1599
        %v1601 = vpop.xlane.xlu0 %1600
        %v1602 = vsel %vm1334, %v1514, 0.0
        %1603 = vadd.xlane.f32.xlu0 %v1602
        %v1604 = vpop.xlane.xlu0 %1603
        %v1605 = vsel %vm1334, %v1516, 0.0
        %1606 = vadd.xlane.f32.xlu0 %v1605
        %v1607 = vpop.xlane.xlu0 %1606
        %v1608 = vsel %vm1334, %v1518, 0.0
        %1609 = vadd.xlane.f32.xlu0 %v1608
        %v1610 = vpop.xlane.xlu0 %1609
        %v1611 = vsel %vm1334, %v1520, 0.0
        %1612 = vadd.xlane.f32.xlu0 %v1611
        %v1613 = vpop.xlane.xlu0 %1612
        %v1614 = vsel %vm1334, %v1522, 0.0
        %1615 = vadd.xlane.f32.xlu0 %v1614
        %v1616 = vpop.xlane.xlu0 %1615
        %v1617 = vsel %vm1334, %v1524, 0.0
        %1618 = vadd.xlane.f32.xlu0 %v1617
        %v1619 = vpop.xlane.xlu0 %1618
        %v1620 = vsel %vm1334, %v1526, 0.0
        %1621 = vadd.xlane.f32.xlu0 %v1620
        %v1622 = vpop.xlane.xlu0 %1621
        %v1623 = vrcp.pop %v1529
        %v1624 = vrcp.pop %v1532
        %v1625 = vrcp.pop %v1535
        %v1626 = vrcp.pop %v1538
        %v1627 = vrcp.pop %v1541
        %v1628 = vrcp.pop %v1544
        %v1629 = vrcp.pop %v1547
        %v1630 = vrcp.pop %v1550
        %v1631 = vrcp.pop %v1553
        %v1632 = vrcp.pop %v1556
        %v1633 = vrcp.pop %v1559
        %v1634 = vrcp.pop %v1562
        %v1635 = vrcp.pop %v1565
        %v1636 = vrcp.pop %v1568
        %v1637 = vrcp.pop %v1571
        %v1638 = vrcp.pop %v1574
        %v1639 = vrcp.pop %v1577
        %v1640 = vrcp.pop %v1580
        %v1641 = vrcp.pop %v1583
        %v1642 = vrcp.pop %v1586
        %v1643 = vrcp.pop %v1589
        %v1644 = vrcp.pop %v1592
        %v1645 = vrcp.pop %v1595
        %v1646 = vrcp.pop %v1598
        %v1647 = vrcp.pop %v1601
        %v1648 = vrcp.pop %v1604
        %v1649 = vrcp.pop %v1607
        %v1650 = vrcp.pop %v1610
        %v1651 = vrcp.pop %v1613
        %v1652 = vrcp.pop %v1616
        %v1653 = vrcp.pop %v1619
        %v1654 = vrcp.pop %v1622
        %v1655 = vmul.f32 %v1464, %v1623
        %v1656 = vmul.f32 %v1466, %v1624
        %v1657 = vmul.f32 %v1468, %v1625
        %v1658 = vmul.f32 %v1470, %v1626
        %v1659 = vmul.f32 %v1472, %v1627
        %v1660 = vmul.f32 %v1474, %v1628
        %v1661 = vmul.f32 %v1476, %v1629
        %v1662 = vmul.f32 %v1478, %v1630
        %v1663 = vmul.f32 %v1480, %v1631
        %v1664 = vmul.f32 %v1482, %v1632
        %v1665 = vmul.f32 %v1484, %v1633
        %v1666 = vmul.f32 %v1486, %v1634
        %v1667 = vmul.f32 %v1488, %v1635
        %v1668 = vmul.f32 %v1490, %v1636
        %v1669 = vmul.f32 %v1492, %v1637
        %v1670 = vmul.f32 %v1494, %v1638
        %v1671 = vmul.f32 %v1496, %v1639
        %v1672 = vmul.f32 %v1498, %v1640
        %v1673 = vmul.f32 %v1500, %v1641
        %v1674 = vmul.f32 %v1502, %v1642
        %v1675 = vmul.f32 %v1504, %v1643
        %v1676 = vmul.f32 %v1506, %v1644
        %v1677 = vmul.f32 %v1508, %v1645
        %v1678 = vmul.f32 %v1510, %v1646
        %v1679 = vmul.f32 %v1512, %v1647
        %v1680 = vmul.f32 %v1514, %v1648
        %v1681 = vmul.f32 %v1516, %v1649
        %v1682 = vmul.f32 %v1518, %v1650
        %v1683 = vmul.f32 %v1520, %v1651
        %v1684 = vmul.f32 %v1522, %v1652
        %v1685 = vmul.f32 %v1524, %v1653
        %v1686 = vmul.f32 %v1526, %v1654
        %v1687 = vpack.c.bf16 %v1656, %v1655
        %v1688 = vpack.c.bf16 %v1658, %v1657
        %v1689 = vpack.c.bf16 %v1660, %v1659
        %v1690 = vpack.c.bf16 %v1662, %v1661
        %v1691 = vpack.c.bf16 %v1664, %v1663
        %v1692 = vpack.c.bf16 %v1666, %v1665
        %v1693 = vpack.c.bf16 %v1668, %v1667
        %v1694 = vpack.c.bf16 %v1670, %v1669
        %v1695 = vpack.c.bf16 %v1672, %v1671
        %v1696 = vpack.c.bf16 %v1674, %v1673
        %v1697 = vpack.c.bf16 %v1676, %v1675
        %v1698 = vpack.c.bf16 %v1678, %v1677
        %v1699 = vpack.c.bf16 %v1680, %v1679
        %v1700 = vpack.c.bf16 %v1682, %v1681
        %v1701 = vpack.c.bf16 %v1684, %v1683
        %v1702 = vpack.c.bf16 %v1686, %v1685
        %1703 = vrot.lane.b32.xlu0 %v486, 64
        %v1704 = vpop.permute.xlu0 %1703
        %v1707 = vsel %vm1334, %v1687, 0
        %1709 = vmatprep.subr.bf16.mxu0 0
        %1710 = vmatpush1.bf16.msra.mxu0 0
        %1711 = vmatprep.subr.bf16.mxu0 0
        %1712 = vmatpush1.bf16.msra.mxu0 0
        %1713 = vmatprep.subr.bf16.mxu0 0
        %1714 = vmatpush1.bf16.msra.mxu0 0
        %1715 = vmatprep.subr.bf16.mxu0 0
        %1716 = vmatpush1.bf16.msra.mxu0 0
        %1717 = vmatprep.subr.bf16.mxu0 0
        %1718 = vmatpush1.bf16.msra.mxu0 0
        %1719 = vmatprep.subr.bf16.mxu0 0
        %1720 = vmatpush1.bf16.msra.mxu0 0
        %1721 = vmatprep.subr.bf16.mxu0 0
        %1722 = vmatpush1.bf16.msra.mxu0 0
        %1723 = vmatprep.subr.bf16.mxu0 0
        %1724 = vmatpush1.bf16.msra.mxu0 %v1704
        %1725 = vmatprep.subr.bf16.mxu0 0
        %1726 = vmatpush2.bf16.msra.mxu0 0
        %1727 = vmatprep.subr.bf16.mxu0 0
        %1728 = vmatpush2.bf16.msra.mxu0 0
        %1729 = vmatprep.subr.bf16.mxu0 0
        %1730 = vmatpush2.bf16.msra.mxu0 0
        %1731 = vmatprep.subr.bf16.mxu0 0
        %1732 = vmatpush2.bf16.msra.mxu0 0
        %1733 = vmatprep.subr.bf16.mxu0 0
        %1734 = vmatpush2.bf16.msra.mxu0 0
        %1735 = vmatprep.subr.bf16.mxu0 0
        %1736 = vmatpush2.bf16.msra.mxu0 0
        %1737 = vmatprep.subr.bf16.mxu0 0
        %1738 = vmatpush2.bf16.msra.mxu0 0
        %1739 = vmatprep.subr.bf16.mxu0 0
        %1740 = vmatpush2.bf16.msra.mxu0 0
        %1741 = vmatprep.mubr.bf16.mxu0 0
        %1742 = vmatmul.mubr.bf16.gmra.mxu0 %v1707
        %v1743 = vpop.f32.mrf.mxu0
        %v1744 = vadd.f32 0.0, %v1743
        %v1745 = vpop.f32.mrf.mxu0
        %v1746 = vpop.f32.mrf.mxu0
        %v1747 = vadd.f32 0.0, %v1746
        %v1748 = vpop.f32.mrf.mxu0
        %1749 = vdwg.mxu0
        %1750 = vrot.lane.b32.xlu0 %v487, 64
        %v1751 = vpop.permute.xlu0 %1750
        %v1754 = vsel %vm1334, %v1688, 0
        %1756 = vmatprep.subr.bf16.mxu0 0
        %1757 = vmatpush1.bf16.msra.mxu0 0
        %1758 = vmatprep.subr.bf16.mxu0 0
        %1759 = vmatpush1.bf16.msra.mxu0 0
        %1760 = vmatprep.subr.bf16.mxu0 0
        %1761 = vmatpush1.bf16.msra.mxu0 0
        %1762 = vmatprep.subr.bf16.mxu0 0
        %1763 = vmatpush1.bf16.msra.mxu0 0
        %1764 = vmatprep.subr.bf16.mxu0 0
        %1765 = vmatpush1.bf16.msra.mxu0 0
        %1766 = vmatprep.subr.bf16.mxu0 0
        %1767 = vmatpush1.bf16.msra.mxu0 0
        %1768 = vmatprep.subr.bf16.mxu0 0
        %1769 = vmatpush1.bf16.msra.mxu0 0
        %1770 = vmatprep.subr.bf16.mxu0 0
        %1771 = vmatpush1.bf16.msra.mxu0 %v1751
        %1772 = vmatprep.subr.bf16.mxu0 0
        %1773 = vmatpush2.bf16.msra.mxu0 0
        %1774 = vmatprep.subr.bf16.mxu0 0
        %1775 = vmatpush2.bf16.msra.mxu0 0
        %1776 = vmatprep.subr.bf16.mxu0 0
        %1777 = vmatpush2.bf16.msra.mxu0 0
        %1778 = vmatprep.subr.bf16.mxu0 0
        %1779 = vmatpush2.bf16.msra.mxu0 0
        %1780 = vmatprep.subr.bf16.mxu0 0
        %1781 = vmatpush2.bf16.msra.mxu0 0
        %1782 = vmatprep.subr.bf16.mxu0 0
        %1783 = vmatpush2.bf16.msra.mxu0 0
        %1784 = vmatprep.subr.bf16.mxu0 0
        %1785 = vmatpush2.bf16.msra.mxu0 0
        %1786 = vmatprep.subr.bf16.mxu0 0
        %1787 = vmatpush2.bf16.msra.mxu0 0
        %1788 = vmatprep.mubr.bf16.mxu0 0
        %1789 = vmatmul.mubr.bf16.gmra.mxu0 %v1754
        %v1790 = vpop.f32.mrf.mxu0
        %v1791 = vadd.f32 0.0, %v1790
        %v1792 = vpop.f32.mrf.mxu0
        %v1793 = vpop.f32.mrf.mxu0
        %v1794 = vadd.f32 0.0, %v1793
        %v1795 = vpop.f32.mrf.mxu0
        %1796 = vdwg.mxu0
        %1797 = vrot.lane.b32.xlu0 %v488, 64
        %v1798 = vpop.permute.xlu0 %1797
        %v1801 = vsel %vm1334, %v1689, 0
        %1803 = vmatprep.subr.bf16.mxu0 0
        %1804 = vmatpush1.bf16.msra.mxu0 0
        %1805 = vmatprep.subr.bf16.mxu0 0
        %1806 = vmatpush1.bf16.msra.mxu0 0
        %1807 = vmatprep.subr.bf16.mxu0 0
        %1808 = vmatpush1.bf16.msra.mxu0 0
        %1809 = vmatprep.subr.bf16.mxu0 0
        %1810 = vmatpush1.bf16.msra.mxu0 0
        %1811 = vmatprep.subr.bf16.mxu0 0
        %1812 = vmatpush1.bf16.msra.mxu0 0
        %1813 = vmatprep.subr.bf16.mxu0 0
        %1814 = vmatpush1.bf16.msra.mxu0 0
        %1815 = vmatprep.subr.bf16.mxu0 0
        %1816 = vmatpush1.bf16.msra.mxu0 0
        %1817 = vmatprep.subr.bf16.mxu0 0
        %1818 = vmatpush1.bf16.msra.mxu0 %v1798
        %1819 = vmatprep.subr.bf16.mxu0 0
        %1820 = vmatpush2.bf16.msra.mxu0 0
        %1821 = vmatprep.subr.bf16.mxu0 0
        %1822 = vmatpush2.bf16.msra.mxu0 0
        %1823 = vmatprep.subr.bf16.mxu0 0
        %1824 = vmatpush2.bf16.msra.mxu0 0
        %1825 = vmatprep.subr.bf16.mxu0 0
        %1826 = vmatpush2.bf16.msra.mxu0 0
        %1827 = vmatprep.subr.bf16.mxu0 0
        %1828 = vmatpush2.bf16.msra.mxu0 0
        %1829 = vmatprep.subr.bf16.mxu0 0
        %1830 = vmatpush2.bf16.msra.mxu0 0
        %1831 = vmatprep.subr.bf16.mxu0 0
        %1832 = vmatpush2.bf16.msra.mxu0 0
        %1833 = vmatprep.subr.bf16.mxu0 0
        %1834 = vmatpush2.bf16.msra.mxu0 0
        %1835 = vmatprep.mubr.bf16.mxu0 0
        %1836 = vmatmul.mubr.bf16.gmra.mxu0 %v1801
        %v1837 = vpop.f32.mrf.mxu0
        %v1838 = vadd.f32 0.0, %v1837
        %v1839 = vpop.f32.mrf.mxu0
        %v1840 = vpop.f32.mrf.mxu0
        %v1841 = vadd.f32 0.0, %v1840
        %v1842 = vpop.f32.mrf.mxu0
        %1843 = vdwg.mxu0
        %1844 = vrot.lane.b32.xlu0 %v489, 64
        %v1845 = vpop.permute.xlu0 %1844
        %v1848 = vsel %vm1334, %v1690, 0
        %1850 = vmatprep.subr.bf16.mxu0 0
        %1851 = vmatpush1.bf16.msra.mxu0 0
        %1852 = vmatprep.subr.bf16.mxu0 0
        %1853 = vmatpush1.bf16.msra.mxu0 0
        %1854 = vmatprep.subr.bf16.mxu0 0
        %1855 = vmatpush1.bf16.msra.mxu0 0
        %1856 = vmatprep.subr.bf16.mxu0 0
        %1857 = vmatpush1.bf16.msra.mxu0 0
        %1858 = vmatprep.subr.bf16.mxu0 0
        %1859 = vmatpush1.bf16.msra.mxu0 0
        %1860 = vmatprep.subr.bf16.mxu0 0
        %1861 = vmatpush1.bf16.msra.mxu0 0
        %1862 = vmatprep.subr.bf16.mxu0 0
        %1863 = vmatpush1.bf16.msra.mxu0 0
        %1864 = vmatprep.subr.bf16.mxu0 0
        %1865 = vmatpush1.bf16.msra.mxu0 %v1845
        %1866 = vmatprep.subr.bf16.mxu0 0
        %1867 = vmatpush2.bf16.msra.mxu0 0
        %1868 = vmatprep.subr.bf16.mxu0 0
        %1869 = vmatpush2.bf16.msra.mxu0 0
        %1870 = vmatprep.subr.bf16.mxu0 0
        %1871 = vmatpush2.bf16.msra.mxu0 0
        %1872 = vmatprep.subr.bf16.mxu0 0
        %1873 = vmatpush2.bf16.msra.mxu0 0
        %1874 = vmatprep.subr.bf16.mxu0 0
        %1875 = vmatpush2.bf16.msra.mxu0 0
        %1876 = vmatprep.subr.bf16.mxu0 0
        %1877 = vmatpush2.bf16.msra.mxu0 0
        %1878 = vmatprep.subr.bf16.mxu0 0
        %1879 = vmatpush2.bf16.msra.mxu0 0
        %1880 = vmatprep.subr.bf16.mxu0 0
        %1881 = vmatpush2.bf16.msra.mxu0 0
        %1882 = vmatprep.mubr.bf16.mxu0 0
        %1883 = vmatmul.mubr.bf16.gmra.mxu0 %v1848
        %v1884 = vpop.f32.mrf.mxu0
        %v1885 = vadd.f32 0.0, %v1884
        %v1886 = vpop.f32.mrf.mxu0
        %v1887 = vpop.f32.mrf.mxu0
        %v1888 = vadd.f32 0.0, %v1887
        %v1889 = vpop.f32.mrf.mxu0
        %1890 = vdwg.mxu0
        %1891 = vrot.lane.b32.xlu0 %v490, 64
        %v1892 = vpop.permute.xlu0 %1891
        %v1895 = vsel %vm1334, %v1691, 0
        %1897 = vmatprep.subr.bf16.mxu0 0
        %1898 = vmatpush1.bf16.msra.mxu0 0
        %1899 = vmatprep.subr.bf16.mxu0 0
        %1900 = vmatpush1.bf16.msra.mxu0 0
        %1901 = vmatprep.subr.bf16.mxu0 0
        %1902 = vmatpush1.bf16.msra.mxu0 0
        %1903 = vmatprep.subr.bf16.mxu0 0
        %1904 = vmatpush1.bf16.msra.mxu0 0
        %1905 = vmatprep.subr.bf16.mxu0 0
        %1906 = vmatpush1.bf16.msra.mxu0 0
        %1907 = vmatprep.subr.bf16.mxu0 0
        %1908 = vmatpush1.bf16.msra.mxu0 0
        %1909 = vmatprep.subr.bf16.mxu0 0
        %1910 = vmatpush1.bf16.msra.mxu0 0
        %1911 = vmatprep.subr.bf16.mxu0 0
        %1912 = vmatpush1.bf16.msra.mxu0 %v1892
        %1913 = vmatprep.subr.bf16.mxu0 0
        %1914 = vmatpush2.bf16.msra.mxu0 0
        %1915 = vmatprep.subr.bf16.mxu0 0
        %1916 = vmatpush2.bf16.msra.mxu0 0
        %1917 = vmatprep.subr.bf16.mxu0 0
        %1918 = vmatpush2.bf16.msra.mxu0 0
        %1919 = vmatprep.subr.bf16.mxu0 0
        %1920 = vmatpush2.bf16.msra.mxu0 0
        %1921 = vmatprep.subr.bf16.mxu0 0
        %1922 = vmatpush2.bf16.msra.mxu0 0
        %1923 = vmatprep.subr.bf16.mxu0 0
        %1924 = vmatpush2.bf16.msra.mxu0 0
        %1925 = vmatprep.subr.bf16.mxu0 0
        %1926 = vmatpush2.bf16.msra.mxu0 0
        %1927 = vmatprep.subr.bf16.mxu0 0
        %1928 = vmatpush2.bf16.msra.mxu0 0
        %1929 = vmatprep.mubr.bf16.mxu0 0
        %1930 = vmatmul.mubr.bf16.gmra.mxu0 %v1895
        %v1931 = vpop.f32.mrf.mxu0
        %v1932 = vadd.f32 0.0, %v1931
        %v1933 = vpop.f32.mrf.mxu0
        %v1934 = vpop.f32.mrf.mxu0
        %v1935 = vadd.f32 0.0, %v1934
        %v1936 = vpop.f32.mrf.mxu0
        %1937 = vdwg.mxu0
        %1938 = vrot.lane.b32.xlu0 %v491, 64
        %v1939 = vpop.permute.xlu0 %1938
        %v1942 = vsel %vm1334, %v1692, 0
        %1944 = vmatprep.subr.bf16.mxu0 0
        %1945 = vmatpush1.bf16.msra.mxu0 0
        %1946 = vmatprep.subr.bf16.mxu0 0
        %1947 = vmatpush1.bf16.msra.mxu0 0
        %1948 = vmatprep.subr.bf16.mxu0 0
        %1949 = vmatpush1.bf16.msra.mxu0 0
        %1950 = vmatprep.subr.bf16.mxu0 0
        %1951 = vmatpush1.bf16.msra.mxu0 0
        %1952 = vmatprep.subr.bf16.mxu0 0
        %1953 = vmatpush1.bf16.msra.mxu0 0
        %1954 = vmatprep.subr.bf16.mxu0 0
        %1955 = vmatpush1.bf16.msra.mxu0 0
        %1956 = vmatprep.subr.bf16.mxu0 0
        %1957 = vmatpush1.bf16.msra.mxu0 0
        %1958 = vmatprep.subr.bf16.mxu0 0
        %1959 = vmatpush1.bf16.msra.mxu0 %v1939
        %1960 = vmatprep.subr.bf16.mxu0 0
        %1961 = vmatpush2.bf16.msra.mxu0 0
        %1962 = vmatprep.subr.bf16.mxu0 0
        %1963 = vmatpush2.bf16.msra.mxu0 0
        %1964 = vmatprep.subr.bf16.mxu0 0
        %1965 = vmatpush2.bf16.msra.mxu0 0
        %1966 = vmatprep.subr.bf16.mxu0 0
        %1967 = vmatpush2.bf16.msra.mxu0 0
        %1968 = vmatprep.subr.bf16.mxu0 0
        %1969 = vmatpush2.bf16.msra.mxu0 0
        %1970 = vmatprep.subr.bf16.mxu0 0
        %1971 = vmatpush2.bf16.msra.mxu0 0
        %1972 = vmatprep.subr.bf16.mxu0 0
        %1973 = vmatpush2.bf16.msra.mxu0 0
        %1974 = vmatprep.subr.bf16.mxu0 0
        %1975 = vmatpush2.bf16.msra.mxu0 0
        %1976 = vmatprep.mubr.bf16.mxu0 0
        %1977 = vmatmul.mubr.bf16.gmra.mxu0 %v1942
        %v1978 = vpop.f32.mrf.mxu0
        %v1979 = vadd.f32 0.0, %v1978
        %v1980 = vpop.f32.mrf.mxu0
        %v1981 = vpop.f32.mrf.mxu0
        %v1982 = vadd.f32 0.0, %v1981
        %v1983 = vpop.f32.mrf.mxu0
        %1984 = vdwg.mxu0
        %1985 = vrot.lane.b32.xlu0 %v492, 64
        %v1986 = vpop.permute.xlu0 %1985
        %v1989 = vsel %vm1334, %v1693, 0
        %1991 = vmatprep.subr.bf16.mxu0 0
        %1992 = vmatpush1.bf16.msra.mxu0 0
        %1993 = vmatprep.subr.bf16.mxu0 0
        %1994 = vmatpush1.bf16.msra.mxu0 0
        %1995 = vmatprep.subr.bf16.mxu0 0
        %1996 = vmatpush1.bf16.msra.mxu0 0
        %1997 = vmatprep.subr.bf16.mxu0 0
        %1998 = vmatpush1.bf16.msra.mxu0 0
        %1999 = vmatprep.subr.bf16.mxu0 0
        %2000 = vmatpush1.bf16.msra.mxu0 0
        %2001 = vmatprep.subr.bf16.mxu0 0
        %2002 = vmatpush1.bf16.msra.mxu0 0
        %2003 = vmatprep.subr.bf16.mxu0 0
        %2004 = vmatpush1.bf16.msra.mxu0 0
        %2005 = vmatprep.subr.bf16.mxu0 0
        %2006 = vmatpush1.bf16.msra.mxu0 %v1986
        %2007 = vmatprep.subr.bf16.mxu0 0
        %2008 = vmatpush2.bf16.msra.mxu0 0
        %2009 = vmatprep.subr.bf16.mxu0 0
        %2010 = vmatpush2.bf16.msra.mxu0 0
        %2011 = vmatprep.subr.bf16.mxu0 0
        %2012 = vmatpush2.bf16.msra.mxu0 0
        %2013 = vmatprep.subr.bf16.mxu0 0
        %2014 = vmatpush2.bf16.msra.mxu0 0
        %2015 = vmatprep.subr.bf16.mxu0 0
        %2016 = vmatpush2.bf16.msra.mxu0 0
        %2017 = vmatprep.subr.bf16.mxu0 0
        %2018 = vmatpush2.bf16.msra.mxu0 0
        %2019 = vmatprep.subr.bf16.mxu0 0
        %2020 = vmatpush2.bf16.msra.mxu0 0
        %2021 = vmatprep.subr.bf16.mxu0 0
        %2022 = vmatpush2.bf16.msra.mxu0 0
        %2023 = vmatprep.mubr.bf16.mxu0 0
        %2024 = vmatmul.mubr.bf16.gmra.mxu0 %v1989
        %v2025 = vpop.f32.mrf.mxu0
        %v2026 = vadd.f32 0.0, %v2025
        %v2027 = vpop.f32.mrf.mxu0
        %v2028 = vpop.f32.mrf.mxu0
        %v2029 = vadd.f32 0.0, %v2028
        %v2030 = vpop.f32.mrf.mxu0
        %2031 = vdwg.mxu0
        %2032 = vrot.lane.b32.xlu0 %v493, 64
        %v2033 = vpop.permute.xlu0 %2032
        %v2036 = vsel %vm1334, %v1694, 0
        %2038 = vmatprep.subr.bf16.mxu0 0
        %2039 = vmatpush1.bf16.msra.mxu0 0
        %2040 = vmatprep.subr.bf16.mxu0 0
        %2041 = vmatpush1.bf16.msra.mxu0 0
        %2042 = vmatprep.subr.bf16.mxu0 0
        %2043 = vmatpush1.bf16.msra.mxu0 0
        %2044 = vmatprep.subr.bf16.mxu0 0
        %2045 = vmatpush1.bf16.msra.mxu0 0
        %2046 = vmatprep.subr.bf16.mxu0 0
        %2047 = vmatpush1.bf16.msra.mxu0 0
        %2048 = vmatprep.subr.bf16.mxu0 0
        %2049 = vmatpush1.bf16.msra.mxu0 0
        %2050 = vmatprep.subr.bf16.mxu0 0
        %2051 = vmatpush1.bf16.msra.mxu0 0
        %2052 = vmatprep.subr.bf16.mxu0 0
        %2053 = vmatpush1.bf16.msra.mxu0 %v2033
        %2054 = vmatprep.subr.bf16.mxu0 0
        %2055 = vmatpush2.bf16.msra.mxu0 0
        %2056 = vmatprep.subr.bf16.mxu0 0
        %2057 = vmatpush2.bf16.msra.mxu0 0
        %2058 = vmatprep.subr.bf16.mxu0 0
        %2059 = vmatpush2.bf16.msra.mxu0 0
        %2060 = vmatprep.subr.bf16.mxu0 0
        %2061 = vmatpush2.bf16.msra.mxu0 0
        %2062 = vmatprep.subr.bf16.mxu0 0
        %2063 = vmatpush2.bf16.msra.mxu0 0
        %2064 = vmatprep.subr.bf16.mxu0 0
        %2065 = vmatpush2.bf16.msra.mxu0 0
        %2066 = vmatprep.subr.bf16.mxu0 0
        %2067 = vmatpush2.bf16.msra.mxu0 0
        %2068 = vmatprep.subr.bf16.mxu0 0
        %2069 = vmatpush2.bf16.msra.mxu0 0
        %2070 = vmatprep.mubr.bf16.mxu0 0
        %2071 = vmatmul.mubr.bf16.gmra.mxu0 %v2036
        %v2072 = vpop.f32.mrf.mxu0
        %v2073 = vadd.f32 0.0, %v2072
        %v2074 = vpop.f32.mrf.mxu0
        %v2075 = vpop.f32.mrf.mxu0
        %v2076 = vadd.f32 0.0, %v2075
        %v2077 = vpop.f32.mrf.mxu0
        %2078 = vdwg.mxu0
        %2079 = vrot.lane.b32.xlu0 %v494, 64
        %v2080 = vpop.permute.xlu0 %2079
        %v2083 = vsel %vm1334, %v1695, 0
        %2085 = vmatprep.subr.bf16.mxu0 0
        %2086 = vmatpush1.bf16.msra.mxu0 0
        %2087 = vmatprep.subr.bf16.mxu0 0
        %2088 = vmatpush1.bf16.msra.mxu0 0
        %2089 = vmatprep.subr.bf16.mxu0 0
        %2090 = vmatpush1.bf16.msra.mxu0 0
        %2091 = vmatprep.subr.bf16.mxu0 0
        %2092 = vmatpush1.bf16.msra.mxu0 0
        %2093 = vmatprep.subr.bf16.mxu0 0
        %2094 = vmatpush1.bf16.msra.mxu0 0
        %2095 = vmatprep.subr.bf16.mxu0 0
        %2096 = vmatpush1.bf16.msra.mxu0 0
        %2097 = vmatprep.subr.bf16.mxu0 0
        %2098 = vmatpush1.bf16.msra.mxu0 0
        %2099 = vmatprep.subr.bf16.mxu0 0
        %2100 = vmatpush1.bf16.msra.mxu0 %v2080
        %2101 = vmatprep.subr.bf16.mxu0 0
        %2102 = vmatpush2.bf16.msra.mxu0 0
        %2103 = vmatprep.subr.bf16.mxu0 0
        %2104 = vmatpush2.bf16.msra.mxu0 0
        %2105 = vmatprep.subr.bf16.mxu0 0
        %2106 = vmatpush2.bf16.msra.mxu0 0
        %2107 = vmatprep.subr.bf16.mxu0 0
        %2108 = vmatpush2.bf16.msra.mxu0 0
        %2109 = vmatprep.subr.bf16.mxu0 0
        %2110 = vmatpush2.bf16.msra.mxu0 0
        %2111 = vmatprep.subr.bf16.mxu0 0
        %2112 = vmatpush2.bf16.msra.mxu0 0
        %2113 = vmatprep.subr.bf16.mxu0 0
        %2114 = vmatpush2.bf16.msra.mxu0 0
        %2115 = vmatprep.subr.bf16.mxu0 0
        %2116 = vmatpush2.bf16.msra.mxu0 0
        %2117 = vmatprep.mubr.bf16.mxu0 0
        %2118 = vmatmul.mubr.bf16.gmra.mxu0 %v2083
        %v2119 = vpop.f32.mrf.mxu0
        %v2120 = vadd.f32 0.0, %v2119
        %v2121 = vpop.f32.mrf.mxu0
        %v2122 = vpop.f32.mrf.mxu0
        %v2123 = vadd.f32 0.0, %v2122
        %v2124 = vpop.f32.mrf.mxu0
        %2125 = vdwg.mxu0
        %2126 = vrot.lane.b32.xlu0 %v495, 64
        %v2127 = vpop.permute.xlu0 %2126
        %v2130 = vsel %vm1334, %v1696, 0
        %2132 = vmatprep.subr.bf16.mxu0 0
        %2133 = vmatpush1.bf16.msra.mxu0 0
        %2134 = vmatprep.subr.bf16.mxu0 0
        %2135 = vmatpush1.bf16.msra.mxu0 0
        %2136 = vmatprep.subr.bf16.mxu0 0
        %2137 = vmatpush1.bf16.msra.mxu0 0
        %2138 = vmatprep.subr.bf16.mxu0 0
        %2139 = vmatpush1.bf16.msra.mxu0 0
        %2140 = vmatprep.subr.bf16.mxu0 0
        %2141 = vmatpush1.bf16.msra.mxu0 0
        %2142 = vmatprep.subr.bf16.mxu0 0
        %2143 = vmatpush1.bf16.msra.mxu0 0
        %2144 = vmatprep.subr.bf16.mxu0 0
        %2145 = vmatpush1.bf16.msra.mxu0 0
        %2146 = vmatprep.subr.bf16.mxu0 0
        %2147 = vmatpush1.bf16.msra.mxu0 %v2127
        %2148 = vmatprep.subr.bf16.mxu0 0
        %2149 = vmatpush2.bf16.msra.mxu0 0
        %2150 = vmatprep.subr.bf16.mxu0 0
        %2151 = vmatpush2.bf16.msra.mxu0 0
        %2152 = vmatprep.subr.bf16.mxu0 0
        %2153 = vmatpush2.bf16.msra.mxu0 0
        %2154 = vmatprep.subr.bf16.mxu0 0
        %2155 = vmatpush2.bf16.msra.mxu0 0
        %2156 = vmatprep.subr.bf16.mxu0 0
        %2157 = vmatpush2.bf16.msra.mxu0 0
        %2158 = vmatprep.subr.bf16.mxu0 0
        %2159 = vmatpush2.bf16.msra.mxu0 0
        %2160 = vmatprep.subr.bf16.mxu0 0
        %2161 = vmatpush2.bf16.msra.mxu0 0
        %2162 = vmatprep.subr.bf16.mxu0 0
        %2163 = vmatpush2.bf16.msra.mxu0 0
        %2164 = vmatprep.mubr.bf16.mxu0 0
        %2165 = vmatmul.mubr.bf16.gmra.mxu0 %v2130
        %v2166 = vpop.f32.mrf.mxu0
        %v2167 = vadd.f32 0.0, %v2166
        %v2168 = vpop.f32.mrf.mxu0
        %v2169 = vpop.f32.mrf.mxu0
        %v2170 = vadd.f32 0.0, %v2169
        %v2171 = vpop.f32.mrf.mxu0
        %2172 = vdwg.mxu0
        %2173 = vrot.lane.b32.xlu0 %v496, 64
        %v2174 = vpop.permute.xlu0 %2173
        %v2177 = vsel %vm1334, %v1697, 0
        %2179 = vmatprep.subr.bf16.mxu0 0
        %2180 = vmatpush1.bf16.msra.mxu0 0
        %2181 = vmatprep.subr.bf16.mxu0 0
        %2182 = vmatpush1.bf16.msra.mxu0 0
        %2183 = vmatprep.subr.bf16.mxu0 0
        %2184 = vmatpush1.bf16.msra.mxu0 0
        %2185 = vmatprep.subr.bf16.mxu0 0
        %2186 = vmatpush1.bf16.msra.mxu0 0
        %2187 = vmatprep.subr.bf16.mxu0 0
        %2188 = vmatpush1.bf16.msra.mxu0 0
        %2189 = vmatprep.subr.bf16.mxu0 0
        %2190 = vmatpush1.bf16.msra.mxu0 0
        %2191 = vmatprep.subr.bf16.mxu0 0
        %2192 = vmatpush1.bf16.msra.mxu0 0
        %2193 = vmatprep.subr.bf16.mxu0 0
        %2194 = vmatpush1.bf16.msra.mxu0 %v2174
        %2195 = vmatprep.subr.bf16.mxu0 0
        %2196 = vmatpush2.bf16.msra.mxu0 0
        %2197 = vmatprep.subr.bf16.mxu0 0
        %2198 = vmatpush2.bf16.msra.mxu0 0
        %2199 = vmatprep.subr.bf16.mxu0 0
        %2200 = vmatpush2.bf16.msra.mxu0 0
        %2201 = vmatprep.subr.bf16.mxu0 0
        %2202 = vmatpush2.bf16.msra.mxu0 0
        %2203 = vmatprep.subr.bf16.mxu0 0
        %2204 = vmatpush2.bf16.msra.mxu0 0
        %2205 = vmatprep.subr.bf16.mxu0 0
        %2206 = vmatpush2.bf16.msra.mxu0 0
        %2207 = vmatprep.subr.bf16.mxu0 0
        %2208 = vmatpush2.bf16.msra.mxu0 0
        %2209 = vmatprep.subr.bf16.mxu0 0
        %2210 = vmatpush2.bf16.msra.mxu0 0
        %2211 = vmatprep.mubr.bf16.mxu0 0
        %2212 = vmatmul.mubr.bf16.gmra.mxu0 %v2177
        %v2213 = vpop.f32.mrf.mxu0
        %v2214 = vadd.f32 0.0, %v2213
        %v2215 = vpop.f32.mrf.mxu0
        %v2216 = vpop.f32.mrf.mxu0
        %v2217 = vadd.f32 0.0, %v2216
        %v2218 = vpop.f32.mrf.mxu0
        %2219 = vdwg.mxu0
        %2220 = vrot.lane.b32.xlu0 %v497, 64
        %v2221 = vpop.permute.xlu0 %2220
        %v2224 = vsel %vm1334, %v1698, 0
        %2226 = vmatprep.subr.bf16.mxu0 0
        %2227 = vmatpush1.bf16.msra.mxu0 0
        %2228 = vmatprep.subr.bf16.mxu0 0
        %2229 = vmatpush1.bf16.msra.mxu0 0
        %2230 = vmatprep.subr.bf16.mxu0 0
        %2231 = vmatpush1.bf16.msra.mxu0 0
        %2232 = vmatprep.subr.bf16.mxu0 0
        %2233 = vmatpush1.bf16.msra.mxu0 0
        %2234 = vmatprep.subr.bf16.mxu0 0
        %2235 = vmatpush1.bf16.msra.mxu0 0
        %2236 = vmatprep.subr.bf16.mxu0 0
        %2237 = vmatpush1.bf16.msra.mxu0 0
        %2238 = vmatprep.subr.bf16.mxu0 0
        %2239 = vmatpush1.bf16.msra.mxu0 0
        %2240 = vmatprep.subr.bf16.mxu0 0
        %2241 = vmatpush1.bf16.msra.mxu0 %v2221
        %2242 = vmatprep.subr.bf16.mxu0 0
        %2243 = vmatpush2.bf16.msra.mxu0 0
        %2244 = vmatprep.subr.bf16.mxu0 0
        %2245 = vmatpush2.bf16.msra.mxu0 0
        %2246 = vmatprep.subr.bf16.mxu0 0
        %2247 = vmatpush2.bf16.msra.mxu0 0
        %2248 = vmatprep.subr.bf16.mxu0 0
        %2249 = vmatpush2.bf16.msra.mxu0 0
        %2250 = vmatprep.subr.bf16.mxu0 0
        %2251 = vmatpush2.bf16.msra.mxu0 0
        %2252 = vmatprep.subr.bf16.mxu0 0
        %2253 = vmatpush2.bf16.msra.mxu0 0
        %2254 = vmatprep.subr.bf16.mxu0 0
        %2255 = vmatpush2.bf16.msra.mxu0 0
        %2256 = vmatprep.subr.bf16.mxu0 0
        %2257 = vmatpush2.bf16.msra.mxu0 0
        %2258 = vmatprep.mubr.bf16.mxu0 0
        %2259 = vmatmul.mubr.bf16.gmra.mxu0 %v2224
        %v2260 = vpop.f32.mrf.mxu0
        %v2261 = vadd.f32 0.0, %v2260
        %v2262 = vpop.f32.mrf.mxu0
        %v2263 = vpop.f32.mrf.mxu0
        %v2264 = vadd.f32 0.0, %v2263
        %v2265 = vpop.f32.mrf.mxu0
        %2266 = vdwg.mxu0
        %2267 = vrot.lane.b32.xlu0 %v498, 64
        %v2268 = vpop.permute.xlu0 %2267
        %v2271 = vsel %vm1334, %v1699, 0
        %2273 = vmatprep.subr.bf16.mxu0 0
        %2274 = vmatpush1.bf16.msra.mxu0 0
        %2275 = vmatprep.subr.bf16.mxu0 0
        %2276 = vmatpush1.bf16.msra.mxu0 0
        %2277 = vmatprep.subr.bf16.mxu0 0
        %2278 = vmatpush1.bf16.msra.mxu0 0
        %2279 = vmatprep.subr.bf16.mxu0 0
        %2280 = vmatpush1.bf16.msra.mxu0 0
        %2281 = vmatprep.subr.bf16.mxu0 0
        %2282 = vmatpush1.bf16.msra.mxu0 0
        %2283 = vmatprep.subr.bf16.mxu0 0
        %2284 = vmatpush1.bf16.msra.mxu0 0
        %2285 = vmatprep.subr.bf16.mxu0 0
        %2286 = vmatpush1.bf16.msra.mxu0 0
        %2287 = vmatprep.subr.bf16.mxu0 0
        %2288 = vmatpush1.bf16.msra.mxu0 %v2268
        %2289 = vmatprep.subr.bf16.mxu0 0
        %2290 = vmatpush2.bf16.msra.mxu0 0
        %2291 = vmatprep.subr.bf16.mxu0 0
        %2292 = vmatpush2.bf16.msra.mxu0 0
        %2293 = vmatprep.subr.bf16.mxu0 0
        %2294 = vmatpush2.bf16.msra.mxu0 0
        %2295 = vmatprep.subr.bf16.mxu0 0
        %2296 = vmatpush2.bf16.msra.mxu0 0
        %2297 = vmatprep.subr.bf16.mxu0 0
        %2298 = vmatpush2.bf16.msra.mxu0 0
        %2299 = vmatprep.subr.bf16.mxu0 0
        %2300 = vmatpush2.bf16.msra.mxu0 0
        %2301 = vmatprep.subr.bf16.mxu0 0
        %2302 = vmatpush2.bf16.msra.mxu0 0
        %2303 = vmatprep.subr.bf16.mxu0 0
        %2304 = vmatpush2.bf16.msra.mxu0 0
        %2305 = vmatprep.mubr.bf16.mxu0 0
        %2306 = vmatmul.mubr.bf16.gmra.mxu0 %v2271
        %v2307 = vpop.f32.mrf.mxu0
        %v2308 = vadd.f32 0.0, %v2307
        %v2309 = vpop.f32.mrf.mxu0
        %v2310 = vpop.f32.mrf.mxu0
        %v2311 = vadd.f32 0.0, %v2310
        %v2312 = vpop.f32.mrf.mxu0
        %2313 = vdwg.mxu0
        %2314 = vrot.lane.b32.xlu0 %v499, 64
        %v2315 = vpop.permute.xlu0 %2314
        %v2318 = vsel %vm1334, %v1700, 0
        %2320 = vmatprep.subr.bf16.mxu0 0
        %2321 = vmatpush1.bf16.msra.mxu0 0
        %2322 = vmatprep.subr.bf16.mxu0 0
        %2323 = vmatpush1.bf16.msra.mxu0 0
        %2324 = vmatprep.subr.bf16.mxu0 0
        %2325 = vmatpush1.bf16.msra.mxu0 0
        %2326 = vmatprep.subr.bf16.mxu0 0
        %2327 = vmatpush1.bf16.msra.mxu0 0
        %2328 = vmatprep.subr.bf16.mxu0 0
        %2329 = vmatpush1.bf16.msra.mxu0 0
        %2330 = vmatprep.subr.bf16.mxu0 0
        %2331 = vmatpush1.bf16.msra.mxu0 0
        %2332 = vmatprep.subr.bf16.mxu0 0
        %2333 = vmatpush1.bf16.msra.mxu0 0
        %2334 = vmatprep.subr.bf16.mxu0 0
        %2335 = vmatpush1.bf16.msra.mxu0 %v2315
        %2336 = vmatprep.subr.bf16.mxu0 0
        %2337 = vmatpush2.bf16.msra.mxu0 0
        %2338 = vmatprep.subr.bf16.mxu0 0
        %2339 = vmatpush2.bf16.msra.mxu0 0
        %2340 = vmatprep.subr.bf16.mxu0 0
        %2341 = vmatpush2.bf16.msra.mxu0 0
        %2342 = vmatprep.subr.bf16.mxu0 0
        %2343 = vmatpush2.bf16.msra.mxu0 0
        %2344 = vmatprep.subr.bf16.mxu0 0
        %2345 = vmatpush2.bf16.msra.mxu0 0
        %2346 = vmatprep.subr.bf16.mxu0 0
        %2347 = vmatpush2.bf16.msra.mxu0 0
        %2348 = vmatprep.subr.bf16.mxu0 0
        %2349 = vmatpush2.bf16.msra.mxu0 0
        %2350 = vmatprep.subr.bf16.mxu0 0
        %2351 = vmatpush2.bf16.msra.mxu0 0
        %2352 = vmatprep.mubr.bf16.mxu0 0
        %2353 = vmatmul.mubr.bf16.gmra.mxu0 %v2318
        %v2354 = vpop.f32.mrf.mxu0
        %v2355 = vadd.f32 0.0, %v2354
        %v2356 = vpop.f32.mrf.mxu0
        %v2357 = vpop.f32.mrf.mxu0
        %v2358 = vadd.f32 0.0, %v2357
        %v2359 = vpop.f32.mrf.mxu0
        %2360 = vdwg.mxu0
        %2361 = vrot.lane.b32.xlu0 %v500, 64
        %v2362 = vpop.permute.xlu0 %2361
        %v2365 = vsel %vm1334, %v1701, 0
        %2367 = vmatprep.subr.bf16.mxu0 0
        %2368 = vmatpush1.bf16.msra.mxu0 0
        %2369 = vmatprep.subr.bf16.mxu0 0
        %2370 = vmatpush1.bf16.msra.mxu0 0
        %2371 = vmatprep.subr.bf16.mxu0 0
        %2372 = vmatpush1.bf16.msra.mxu0 0
        %2373 = vmatprep.subr.bf16.mxu0 0
        %2374 = vmatpush1.bf16.msra.mxu0 0
        %2375 = vmatprep.subr.bf16.mxu0 0
        %2376 = vmatpush1.bf16.msra.mxu0 0
        %2377 = vmatprep.subr.bf16.mxu0 0
        %2378 = vmatpush1.bf16.msra.mxu0 0
        %2379 = vmatprep.subr.bf16.mxu0 0
        %2380 = vmatpush1.bf16.msra.mxu0 0
        %2381 = vmatprep.subr.bf16.mxu0 0
        %2382 = vmatpush1.bf16.msra.mxu0 %v2362
        %2383 = vmatprep.subr.bf16.mxu0 0
        %2384 = vmatpush2.bf16.msra.mxu0 0
        %2385 = vmatprep.subr.bf16.mxu0 0
        %2386 = vmatpush2.bf16.msra.mxu0 0
        %2387 = vmatprep.subr.bf16.mxu0 0
        %2388 = vmatpush2.bf16.msra.mxu0 0
        %2389 = vmatprep.subr.bf16.mxu0 0
        %2390 = vmatpush2.bf16.msra.mxu0 0
        %2391 = vmatprep.subr.bf16.mxu0 0
        %2392 = vmatpush2.bf16.msra.mxu0 0
        %2393 = vmatprep.subr.bf16.mxu0 0
        %2394 = vmatpush2.bf16.msra.mxu0 0
        %2395 = vmatprep.subr.bf16.mxu0 0
        %2396 = vmatpush2.bf16.msra.mxu0 0
        %2397 = vmatprep.subr.bf16.mxu0 0
        %2398 = vmatpush2.bf16.msra.mxu0 0
        %2399 = vmatprep.mubr.bf16.mxu0 0
        %2400 = vmatmul.mubr.bf16.gmra.mxu0 %v2365
        %v2401 = vpop.f32.mrf.mxu0
        %v2402 = vadd.f32 0.0, %v2401
        %v2403 = vpop.f32.mrf.mxu0
        %v2404 = vpop.f32.mrf.mxu0
        %v2405 = vadd.f32 0.0, %v2404
        %v2406 = vpop.f32.mrf.mxu0
        %2407 = vdwg.mxu0
        %2408 = vrot.lane.b32.xlu0 %v501, 64
        %v2409 = vpop.permute.xlu0 %2408
        %v2412 = vsel %vm1334, %v1702, 0
        %2414 = vmatprep.subr.bf16.mxu0 0
        %2415 = vmatpush1.bf16.msra.mxu0 0
        %2416 = vmatprep.subr.bf16.mxu0 0
        %2417 = vmatpush1.bf16.msra.mxu0 0
        %2418 = vmatprep.subr.bf16.mxu0 0
        %2419 = vmatpush1.bf16.msra.mxu0 0
        %2420 = vmatprep.subr.bf16.mxu0 0
        %2421 = vmatpush1.bf16.msra.mxu0 0
        %2422 = vmatprep.subr.bf16.mxu0 0
        %2423 = vmatpush1.bf16.msra.mxu0 0
        %2424 = vmatprep.subr.bf16.mxu0 0
        %2425 = vmatpush1.bf16.msra.mxu0 0
        %2426 = vmatprep.subr.bf16.mxu0 0
        %2427 = vmatpush1.bf16.msra.mxu0 0
        %2428 = vmatprep.subr.bf16.mxu0 0
        %2429 = vmatpush1.bf16.msra.mxu0 %v2409
        %2430 = vmatprep.subr.bf16.mxu0 0
        %2431 = vmatpush2.bf16.msra.mxu0 0
        %2432 = vmatprep.subr.bf16.mxu0 0
        %2433 = vmatpush2.bf16.msra.mxu0 0
        %2434 = vmatprep.subr.bf16.mxu0 0
        %2435 = vmatpush2.bf16.msra.mxu0 0
        %2436 = vmatprep.subr.bf16.mxu0 0
        %2437 = vmatpush2.bf16.msra.mxu0 0
        %2438 = vmatprep.subr.bf16.mxu0 0
        %2439 = vmatpush2.bf16.msra.mxu0 0
        %2440 = vmatprep.subr.bf16.mxu0 0
        %2441 = vmatpush2.bf16.msra.mxu0 0
        %2442 = vmatprep.subr.bf16.mxu0 0
        %2443 = vmatpush2.bf16.msra.mxu0 0
        %2444 = vmatprep.subr.bf16.mxu0 0
        %2445 = vmatpush2.bf16.msra.mxu0 0
        %2446 = vmatprep.mubr.bf16.mxu0 0
        %2447 = vmatmul.mubr.bf16.gmra.mxu0 %v2412
        %v2448 = vpop.f32.mrf.mxu0
        %v2449 = vadd.f32 0.0, %v2448
        %v2450 = vpop.f32.mrf.mxu0
        %v2451 = vpop.f32.mrf.mxu0
        %v2452 = vadd.f32 0.0, %v2451
        %v2453 = vpop.f32.mrf.mxu0
        %2454 = vdwg.mxu0
        %v2455 = vpack.c.bf16 %v1747, %v1744
        %v2456 = vpack.c.bf16 %v1794, %v1791
        %v2457 = vpack.c.bf16 %v1841, %v1838
        %v2458 = vpack.c.bf16 %v1888, %v1885
        %v2459 = vpack.c.bf16 %v1935, %v1932
        %v2460 = vpack.c.bf16 %v1982, %v1979
        %v2461 = vpack.c.bf16 %v2029, %v2026
        %v2462 = vpack.c.bf16 %v2076, %v2073
        %v2463 = vpack.c.bf16 %v2123, %v2120
        %v2464 = vpack.c.bf16 %v2170, %v2167
        %v2465 = vpack.c.bf16 %v2217, %v2214
        %v2466 = vpack.c.bf16 %v2264, %v2261
        %v2467 = vpack.c.bf16 %v2311, %v2308
        %v2468 = vpack.c.bf16 %v2358, %v2355
        %v2469 = vpack.c.bf16 %v2405, %v2402
        %v2470 = vpack.c.bf16 %v2452, %v2449
        %v2471 = vld [vmem:[#allocation7] sm:$0xff]
        %v2472 = vld [vmem:[#allocation7 + $0x8] sm:$0xff]
        %v2473 = vld [vmem:[#allocation7 + $0x10] sm:$0xff]
        %v2474 = vld [vmem:[#allocation7 + $0x18] sm:$0xff]
        %v2475 = vpack.c.bf16 %v2472, %v2471
        %v2476 = vpack.c.bf16 %v2474, %v2473
        %v2478 = vsel %vm276, %v2455, 0
        %v2481 = vsel %vm276, %v2456, 0
        %v2484 = vsel %vm276, %v2457, 0
        %v2487 = vsel %vm276, %v2458, 0
        %v2490 = vsel %vm276, %v2459, 0
        %v2493 = vsel %vm276, %v2460, 0
        %v2496 = vsel %vm276, %v2461, 0
        %v2499 = vsel %vm276, %v2462, 0
        %v2502 = vsel %vm276, %v2463, 0
        %v2505 = vsel %vm276, %v2464, 0
        %v2508 = vsel %vm276, %v2465, 0
        %v2511 = vsel %vm276, %v2466, 0
        %v2514 = vsel %vm276, %v2467, 0
        %v2517 = vsel %vm276, %v2468, 0
        %v2520 = vsel %vm276, %v2469, 0
        %v2523 = vsel %vm276, %v2470, 0
        %2525 = vmatprep.subr.bf16.mxu0 0
        %2526 = vmatpush1.bf16.msra.mxu0 0
        %2527 = vmatprep.subr.bf16.mxu0 0
        %2528 = vmatpush1.bf16.msra.mxu0 0
        %2529 = vmatprep.subr.bf16.mxu0 0
        %2530 = vmatpush1.bf16.msra.mxu0 0
        %2531 = vmatprep.subr.bf16.mxu0 0
        %2532 = vmatpush1.bf16.msra.mxu0 0
        %2533 = vmatprep.subr.bf16.mxu0 0
        %2534 = vmatpush1.bf16.msra.mxu0 0
        %2535 = vmatprep.subr.bf16.mxu0 0
        %2536 = vmatpush1.bf16.msra.mxu0 0
        %2537 = vmatprep.subr.bf16.mxu0 0
        %2538 = vmatpush1.bf16.msra.mxu0 %v2476
        %2539 = vmatprep.subr.bf16.mxu0 0
        %2540 = vmatpush1.bf16.msra.mxu0 %v2475
        %2541 = vmatprep.subr.bf16.mxu0 0
        %2542 = vmatpush2.bf16.msra.mxu0 0
        %2543 = vmatprep.subr.bf16.mxu0 0
        %2544 = vmatpush2.bf16.msra.mxu0 0
        %2545 = vmatprep.subr.bf16.mxu0 0
        %2546 = vmatpush2.bf16.msra.mxu0 0
        %2547 = vmatprep.subr.bf16.mxu0 0
        %2548 = vmatpush2.bf16.msra.mxu0 0
        %2549 = vmatprep.subr.bf16.mxu0 0
        %2550 = vmatpush2.bf16.msra.mxu0 0
        %2551 = vmatprep.subr.bf16.mxu0 0
        %2552 = vmatpush2.bf16.msra.mxu0 0
        %2553 = vmatprep.subr.bf16.mxu0 0
        %2554 = vmatpush2.bf16.msra.mxu0 0
        %2555 = vmatprep.subr.bf16.mxu0 0
        %2556 = vmatpush2.bf16.msra.mxu0 0
        %2557 = vmatprep.mubr.bf16.mxu0 0
        %2558 = vmatmul.mubr.bf16.gmra.mxu0 %v2478
        %v2559 = vpop.f32.mrf.mxu0
        %v2560 = vadd.f32 0.0, %v2559
        %v2561 = vpop.f32.mrf.mxu0
        %v2562 = vpop.f32.mrf.mxu0
        %v2563 = vadd.f32 0.0, %v2562
        %v2564 = vpop.f32.mrf.mxu0
        %2565 = vmatprep.mubr.bf16.mxu0 0
        %2566 = vmatmul.mubr.bf16.gmra.mxu0 %v2481
        %v2567 = vpop.f32.mrf.mxu0
        %v2568 = vadd.f32 0.0, %v2567
        %v2569 = vpop.f32.mrf.mxu0
        %v2570 = vpop.f32.mrf.mxu0
        %v2571 = vadd.f32 0.0, %v2570
        %v2572 = vpop.f32.mrf.mxu0
        %2573 = vmatprep.mubr.bf16.mxu0 0
        %2574 = vmatmul.mubr.bf16.gmra.mxu0 %v2484
        %v2575 = vpop.f32.mrf.mxu0
        %v2576 = vadd.f32 0.0, %v2575
        %v2577 = vpop.f32.mrf.mxu0
        %v2578 = vpop.f32.mrf.mxu0
        %v2579 = vadd.f32 0.0, %v2578
        %v2580 = vpop.f32.mrf.mxu0
        %2581 = vmatprep.mubr.bf16.mxu0 0
        %2582 = vmatmul.mubr.bf16.gmra.mxu0 %v2487
        %v2583 = vpop.f32.mrf.mxu0
        %v2584 = vadd.f32 0.0, %v2583
        %v2585 = vpop.f32.mrf.mxu0
        %v2586 = vpop.f32.mrf.mxu0
        %v2587 = vadd.f32 0.0, %v2586
        %v2588 = vpop.f32.mrf.mxu0
        %2589 = vmatprep.mubr.bf16.mxu0 0
        %2590 = vmatmul.mubr.bf16.gmra.mxu0 %v2490
        %v2591 = vpop.f32.mrf.mxu0
        %v2592 = vadd.f32 0.0, %v2591
        %v2593 = vpop.f32.mrf.mxu0
        %v2594 = vpop.f32.mrf.mxu0
        %v2595 = vadd.f32 0.0, %v2594
        %v2596 = vpop.f32.mrf.mxu0
        %2597 = vmatprep.mubr.bf16.mxu0 0
        %2598 = vmatmul.mubr.bf16.gmra.mxu0 %v2493
        %v2599 = vpop.f32.mrf.mxu0
        %v2600 = vadd.f32 0.0, %v2599
        %v2601 = vpop.f32.mrf.mxu0
        %v2602 = vpop.f32.mrf.mxu0
        %v2603 = vadd.f32 0.0, %v2602
        %v2604 = vpop.f32.mrf.mxu0
        %2605 = vmatprep.mubr.bf16.mxu0 0
        %2606 = vmatmul.mubr.bf16.gmra.mxu0 %v2496
        %v2607 = vpop.f32.mrf.mxu0
        %v2608 = vadd.f32 0.0, %v2607
        %v2609 = vpop.f32.mrf.mxu0
        %v2610 = vpop.f32.mrf.mxu0
        %v2611 = vadd.f32 0.0, %v2610
        %v2612 = vpop.f32.mrf.mxu0
        %2613 = vmatprep.mubr.bf16.mxu0 0
        %2614 = vmatmul.mubr.bf16.gmra.mxu0 %v2499
        %v2615 = vpop.f32.mrf.mxu0
        %v2616 = vadd.f32 0.0, %v2615
        %v2617 = vpop.f32.mrf.mxu0
        %v2618 = vpop.f32.mrf.mxu0
        %v2619 = vadd.f32 0.0, %v2618
        %v2620 = vpop.f32.mrf.mxu0
        %2621 = vmatprep.mubr.bf16.mxu0 0
        %2622 = vmatmul.mubr.bf16.gmra.mxu0 %v2502
        %v2623 = vpop.f32.mrf.mxu0
        %v2624 = vadd.f32 0.0, %v2623
        %v2625 = vpop.f32.mrf.mxu0
        %v2626 = vpop.f32.mrf.mxu0
        %v2627 = vadd.f32 0.0, %v2626
        %v2628 = vpop.f32.mrf.mxu0
        %2629 = vmatprep.mubr.bf16.mxu0 0
        %2630 = vmatmul.mubr.bf16.gmra.mxu0 %v2505
        %v2631 = vpop.f32.mrf.mxu0
        %v2632 = vadd.f32 0.0, %v2631
        %v2633 = vpop.f32.mrf.mxu0
        %v2634 = vpop.f32.mrf.mxu0
        %v2635 = vadd.f32 0.0, %v2634
        %v2636 = vpop.f32.mrf.mxu0
        %2637 = vmatprep.mubr.bf16.mxu0 0
        %2638 = vmatmul.mubr.bf16.gmra.mxu0 %v2508
        %v2639 = vpop.f32.mrf.mxu0
        %v2640 = vadd.f32 0.0, %v2639
        %v2641 = vpop.f32.mrf.mxu0
        %v2642 = vpop.f32.mrf.mxu0
        %v2643 = vadd.f32 0.0, %v2642
        %v2644 = vpop.f32.mrf.mxu0
        %2645 = vmatprep.mubr.bf16.mxu0 0
        %2646 = vmatmul.mubr.bf16.gmra.mxu0 %v2511
        %v2647 = vpop.f32.mrf.mxu0
        %v2648 = vadd.f32 0.0, %v2647
        %v2649 = vpop.f32.mrf.mxu0
        %v2650 = vpop.f32.mrf.mxu0
        %v2651 = vadd.f32 0.0, %v2650
        %v2652 = vpop.f32.mrf.mxu0
        %2653 = vmatprep.mubr.bf16.mxu0 0
        %2654 = vmatmul.mubr.bf16.gmra.mxu0 %v2514
        %v2655 = vpop.f32.mrf.mxu0
        %v2656 = vadd.f32 0.0, %v2655
        %v2657 = vpop.f32.mrf.mxu0
        %v2658 = vpop.f32.mrf.mxu0
        %v2659 = vadd.f32 0.0, %v2658
        %v2660 = vpop.f32.mrf.mxu0
        %2661 = vmatprep.mubr.bf16.mxu0 0
        %2662 = vmatmul.mubr.bf16.gmra.mxu0 %v2517
        %v2663 = vpop.f32.mrf.mxu0
        %v2664 = vadd.f32 0.0, %v2663
        %v2665 = vpop.f32.mrf.mxu0
        %v2666 = vpop.f32.mrf.mxu0
        %v2667 = vadd.f32 0.0, %v2666
        %v2668 = vpop.f32.mrf.mxu0
        %2669 = vmatprep.mubr.bf16.mxu0 0
        %2670 = vmatmul.mubr.bf16.gmra.mxu0 %v2520
        %v2671 = vpop.f32.mrf.mxu0
        %v2672 = vadd.f32 0.0, %v2671
        %v2673 = vpop.f32.mrf.mxu0
        %v2674 = vpop.f32.mrf.mxu0
        %v2675 = vadd.f32 0.0, %v2674
        %v2676 = vpop.f32.mrf.mxu0
        %2677 = vmatprep.mubr.bf16.mxu0 0
        %2678 = vmatmul.mubr.bf16.gmra.mxu0 %v2523
        %v2679 = vpop.f32.mrf.mxu0
        %v2680 = vadd.f32 0.0, %v2679
        %v2681 = vpop.f32.mrf.mxu0
        %v2682 = vpop.f32.mrf.mxu0
        %v2683 = vadd.f32 0.0, %v2682
        %v2684 = vpop.f32.mrf.mxu0
        %2685 = vdwg.mxu0
        %2686 = vst.msk [vmem:[%s218] sm:$0xff] %vm276, %v2560
        %2687 = vst.msk [vmem:[%s218 + $0x8] sm:$0xff] %vm276, %v2563
        %2688 = vst.msk [vmem:[%s218 + $0x10] sm:$0xff] %vm276, %v2568
        %2689 = vst.msk [vmem:[%s218 + $0x18] sm:$0xff] %vm276, %v2571
        %2690 = vst.msk [vmem:[%s218 + $0x20] sm:$0xff] %vm276, %v2576
        %2691 = vst.msk [vmem:[%s218 + $0x28] sm:$0xff] %vm276, %v2579
        %2692 = vst.msk [vmem:[%s218 + $0x30] sm:$0xff] %vm276, %v2584
        %2693 = vst.msk [vmem:[%s218 + $0x38] sm:$0xff] %vm276, %v2587
        %2694 = vst.msk [vmem:[%s218 + $0x40] sm:$0xff] %vm276, %v2592
        %2695 = vst.msk [vmem:[%s218 + $0x48] sm:$0xff] %vm276, %v2595
        %2696 = vst.msk [vmem:[%s218 + $0x50] sm:$0xff] %vm276, %v2600
        %2697 = vst.msk [vmem:[%s218 + $0x58] sm:$0xff] %vm276, %v2603
        %2698 = vst.msk [vmem:[%s218 + $0x60] sm:$0xff] %vm276, %v2608
        %2699 = vst.msk [vmem:[%s218 + $0x68] sm:$0xff] %vm276, %v2611
        %2700 = vst.msk [vmem:[%s218 + $0x70] sm:$0xff] %vm276, %v2616
        %2701 = vst.msk [vmem:[%s218 + $0x78] sm:$0xff] %vm276, %v2619
        %2702 = vst.msk [vmem:[%s218 + $0x80] sm:$0xff] %vm276, %v2624
        %2703 = vst.msk [vmem:[%s218 + $0x88] sm:$0xff] %vm276, %v2627
        %2704 = vst.msk [vmem:[%s218 + $0x90] sm:$0xff] %vm276, %v2632
        %2705 = vst.msk [vmem:[%s218 + $0x98] sm:$0xff] %vm276, %v2635
        %2706 = vst.msk [vmem:[%s218 + $0xa0] sm:$0xff] %vm276, %v2640
        %2707 = vst.msk [vmem:[%s218 + $0xa8] sm:$0xff] %vm276, %v2643
        %2708 = vst.msk [vmem:[%s218 + $0xb0] sm:$0xff] %vm276, %v2648
        %2709 = vst.msk [vmem:[%s218 + $0xb8] sm:$0xff] %vm276, %v2651
        %2710 = vst.msk [vmem:[%s218 + $0xc0] sm:$0xff] %vm276, %v2656
        %2711 = vst.msk [vmem:[%s218 + $0xc8] sm:$0xff] %vm276, %v2659
        %2712 = vst.msk [vmem:[%s218 + $0xd0] sm:$0xff] %vm276, %v2664
        %2713 = vst.msk [vmem:[%s218 + $0xd8] sm:$0xff] %vm276, %v2667
        %2714 = vst.msk [vmem:[%s218 + $0xe0] sm:$0xff] %vm276, %v2672
        %2715 = vst.msk [vmem:[%s218 + $0xe8] sm:$0xff] %vm276, %v2675
        %2716 = vst.msk [vmem:[%s218 + $0xf0] sm:$0xff] %vm276, %v2680
        %2717 = vst.msk [vmem:[%s218 + $0xf8] sm:$0xff] %vm276, %v2683
        %s2718 = sand.u32 %s97, 1
        %s2719 = scalar_lea.sflag [#allocation4], %s2718
        %s2720 = sand.u32 %s97, 1
        %s2721 = smul.addr %s2720, 256
        %s2722 = scalar_lea.vmem [#allocation8], %s2721
        // Predicated region
        $region45: #{tpu_custom_call.1} parent=31 // pred_check
          %p2723 = pneg %p107
        $region46: #{tpu_custom_call.1} parent=31 // pred_check_branch
          %2725 = sbr.rel (%p2723) target = $region48
        $region47: #{tpu_custom_call.1} parent=31 // pred_region
          %s2726 = smul.u32 16, %s21
          %s2728 = ssub.s32 4096, 4096
          %2729 = vsyncadd %s2719, %s2728
          %s2730 = smul.addr %s2726, 2
          %s2731 = smul.addr %s2730, 128
          %s2732 = scalar_lea.hbm %s3, %s2731
          %s2733 = sshll.u32 %s2722, 4
          %s2734 = int_to_ptr.vmem [resolvable:$true] %s2733
          %2739 = dma.vmem_to_hbm [thread:$0]  %s2734, 4096, %s2732, %s2719, 128, 128, 8
        $region48: #{tpu_custom_call.1} parent=31 // pred_fallthru
          _
      $region32: #{tpu_custom_call.1} parent=5 // pred_fallthru
        _
      %p2740 = scmp.le.s32.totalorder 2, %s16
      // Predicated region
      $region49: #{tpu_custom_call.1} parent=5 // pred_check
        %p2741 = pneg %p2740
      $region50: #{tpu_custom_call.1} parent=5 // pred_check_branch
        %2743 = sbr.rel (%p2741) target = $region52
      $region51: #{tpu_custom_call.1} parent=5 // pred_region
        %s2744 = ssub.s32 %s16, 2
        // Predicated region
        $region53: #{tpu_custom_call.1} parent=51 // pred_check
          %p2745 = pneg %p113
        $region54: #{tpu_custom_call.1} parent=51 // pred_check_branch
          %2747 = sbr.rel (%p2745) target = $region56
        $region55: #{tpu_custom_call.1} parent=51 // pred_region
          %s2748 = sand.u32 %s98, 1
          %s2749 = scalar_lea.sflag [#allocation4], %s2748
          %s2750 = sand.u32 %s98, 1
          %s2751 = smul.addr %s2750, 256
          %s2752 = scalar_lea.vmem [#allocation8], %s2751
          %2753 = dma.done %s2749, 4096
        $region56: #{tpu_custom_call.1} parent=51 // pred_fallthru
          _
      $region52: #{tpu_custom_call.1} parent=5 // pred_fallthru
        _
    $region6: #{tpu_custom_call.1} parent=1 // loop_footer
      %s20 = sadd.s32 1, %s16
    $region7: #{tpu_custom_call.1} parent=1 // loop_footer_branch
      %15 = sbr.rel target = $region3
    $region8: #{tpu_custom_call.1} parent=1 // loop_exit
      _
    %2754 = vsyncpa [#allocation3], 1
    %s2755 = scalar_lea.sflag [#allocation3], 1
    %2756 = vsyncpa %s2755, 1
    %2757 = vsyncpa [#allocation6], 1
    %2758 = vsyncpa [#allocation4], 1
    %s2759 = scalar_lea.sflag [#allocation4], 1
    %2760 = vsyncpa %s2759, 1

</llo_original>
